<compile_context>
chip_gen: v7x
topology: tpu7x:2x2x1
jax: 0.10.0
libtpu: 0.0.40
codegen_flags: <defaults>
</compile_context>

<pallas_src>
import numpy as np
import jax
import jax.numpy as jnp
from jax.experimental import pallas as pl
from jax.experimental.pallas import tpu as pltpu


# ------------------------------------------------------------- interpolation --

def _upsample2_matrix(n: int) -> np.ndarray:
    """(2n, n) matrix of 1-D x2 linear-interp weights, align_corners=False
    (PyTorch nn.Upsample default); out-of-range source indices are clamped.
    All weights are dyadic rationals -> exact in bfloat16."""
    m = np.zeros((2 * n, n), np.float32)
    for j in range(2 * n):
        src = (j + 0.5) / 2.0 - 0.5
        i0 = int(np.floor(src))
        frac = src - i0
        m[j, min(max(i0, 0), n - 1)] += 1.0 - frac
        m[j, min(max(i0 + 1, 0), n - 1)] += frac
    return m


# --------------------------------------------------------------------- kernel --

def _upconv_kernel(xm_ref, xc_ref, xp_ref, w_ref, b_ref, m_ref, o_ref):
    """One (batch n, input-depth d) grid step.

    xm/xc/xp : (1, 1, H*W, Cin) bf16   depth slices d-1, d, d+1 (edge-clamped
                                       by the BlockSpec index_maps).
    w        : (Cin, Cout) bf16        1x1x1 conv weight.
    b        : (1, Cout)   f32         conv bias.
    m        : (4*H*W, H*W) bf16       kron(U_H, U_W) bilinear x2 matrix.
    o        : (1, 2, 4*H*W, Cout) f32 output depth slices 2d and 2d+1.
    """
    xm = xm_ref[0, 0].astype(jnp.float32)
    xc = xc_ref[0, 0].astype(jnp.float32)
    xp = xp_ref[0, 0].astype(jnp.float32)
    w = w_ref[...]
    b = b_ref[...]
    m = m_ref[...]

    # Depth-axis trilinear taps for output depths 2d (even) and 2d+1 (odd).
    z_even = (0.25 * xm + 0.75 * xc).astype(jnp.bfloat16)
    z_odd = (0.75 * xc + 0.25 * xp).astype(jnp.bfloat16)

    # 1x1x1 conv (commuted ahead of the upsample; exact) + bias, f32 accumulate.
    y_even = jnp.dot(z_even, w, preferred_element_type=jnp.float32) + b   # (HW, Cout)
    y_odd = jnp.dot(z_odd, w, preferred_element_type=jnp.float32) + b

    # Fused H/W bilinear x2 upsample as one MXU matmul per output depth slice.
    o_ref[0, 0] = jnp.dot(m, y_even.astype(jnp.bfloat16),
                          preferred_element_type=jnp.float32)
    o_ref[0, 1] = jnp.dot(m, y_odd.astype(jnp.bfloat16),
                          preferred_element_type=jnp.float32)


def upconv2x2x2(x_ncdhw, conv_w, conv_b):
    """UpConv2x2x2.forward:  Conv3d(1x1x1)(Upsample(x2 trilinear)(x)).

    x_ncdhw : (N, C, D, H, W) float32
    conv_w  : (C//2, C, 1, 1, 1) float32  (torch Conv3d weight layout)
    conv_b  : (C//2,) float32
    returns : (N, C//2, 2D, 2H, 2W) float32
    """
    N, C, D, H, W = x_ncdhw.shape
    Cout = conv_w.shape[0]
    HW = H * W

    # NCDHW -> (N, D, H*W, C): channels on the 128-lane axis; bf16 MXU feed.
    x = jnp.transpose(x_ncdhw, (0, 2, 3, 4, 1)).reshape(N, D, HW, C)
    x = x.astype(jnp.bfloat16)

    wm = conv_w.reshape(Cout, C).T.astype(jnp.bfloat16)            # (C, Cout)
    bias = conv_b.astype(jnp.float32).reshape(1, Cout)
    m_hw = jnp.asarray(np.kron(_upsample2_matrix(H), _upsample2_matrix(W)),
                       dtype=jnp.bfloat16)                          # (4HW, HW)

    def x_index(off):
        def idx(n, d):
            return (n, jnp.clip(d + off, 0, D - 1), 0, 0)
        return idx

    out = pl.pallas_call(
        _upconv_kernel,
        out_shape=jax.ShapeDtypeStruct((N, 2 * D, 4 * HW, Cout), jnp.float32),
        grid_spec=pltpu.PrefetchScalarGridSpec(
            num_scalar_prefetch=0,
            grid=(N, D),
            in_specs=[
                pl.BlockSpec((1, 1, HW, C), x_index(-1)),   # depth slice d-1
                pl.BlockSpec((1, 1, HW, C), x_index(0)),    # depth slice d
                pl.BlockSpec((1, 1, HW, C), x_index(+1)),   # depth slice d+1
                pl.BlockSpec((C, Cout), lambda n, d: (0, 0)),
                pl.BlockSpec((1, Cout), lambda n, d: (0, 0)),
                pl.BlockSpec((4 * HW, HW), lambda n, d: (0, 0)),
            ],
            out_specs=pl.BlockSpec((1, 2, 4 * HW, Cout),
                                   lambda n, d: (n, d, 0, 0)),
        ),
        compiler_params=pltpu.CompilerParams(
            dimension_semantics=("parallel", "parallel")),
    )(x, x, x, wm, bias, m_hw)

    # (N, 2D, 4HW, Cout) -> (N, 2D, 2H, 2W, Cout) is a free row-major reshape.
    out = out.reshape(N, 2 * D, 2 * H, 2 * W, Cout)
    # TODO(synk): the final NCDHW boundary transpose stays in XLA; in a full
    # channels-last pipeline it disappears entirely.
    return jnp.transpose(out, (0, 4, 1, 2, 3))


# ------------------------------------------------------------ f32 reference --

def _upconv_reference(x, conv_w, conv_b):
    """Pure-JAX f32 reference in the literal PyTorch order: upsample then conv."""
    N, C, D, H, W = x.shape

    def up2(t, axis):
        n = t.shape[axis]
        idx = jnp.arange(n)
        tm = jnp.take(t, jnp.clip(idx - 1, 0, n - 1), axis=axis)
        tp = jnp.take(t, jnp.clip(idx + 1, 0, n - 1), axis=axis)
        even = 0.25 * tm + 0.75 * t
        odd = 0.75 * t + 0.25 * tp
        st = jnp.stack([even, odd], axis=axis + 1)
        return st.reshape(t.shape[:axis] + (2 * n,) + t.shape[axis + 1:])

    u = up2(up2(up2(x, 2), 3), 4)
    w2 = conv_w.reshape(conv_w.shape[0], C)
    y = jnp.einsum('ncdhw,oc->nodhw', u, w2)
    return y + conv_b.reshape(1, -1, 1, 1, 1)


# ----------------------------------------------------------------------- main --

if __name__ == "__main__":
    key = jax.random.PRNGKey(0)
    kx, kw, kb = jax.random.split(key, 3)

    # channels=256 -> Cout=128 keeps the output block lane-dense.
    N, C, D, H, W = 2, 256, 4, 8, 8
    x = jax.random.normal(kx, (N, C, D, H, W), jnp.float32)
    conv_w = jax.random.normal(kw, (C // 2, C, 1, 1, 1), jnp.float32) * np.sqrt(2.0 / C)
    conv_b = jax.random.normal(kb, (C // 2,), jnp.float32) * 0.1

    fwd = jax.jit(upconv2x2x2)
    out = jax.block_until_ready(fwd(x, conv_w, conv_b))

    assert out.shape == (N, C // 2, 2 * D, 2 * H, 2 * W), out.shape
    assert bool(jnp.all(jnp.isfinite(out)))

    ref = _upconv_reference(x, conv_w, conv_b)
    rel_err = float(jnp.sqrt(jnp.sum((out - ref) ** 2)) /
                    jnp.sqrt(jnp.sum(ref ** 2)))
    assert rel_err < 0.05, rel_err   # bf16-MXU kernel vs f32 reference

    print("KERNEL_OK")
</pallas_src>

<mosaic_0001>
module attributes {stable_mosaic.version = 11 : i64} {
  func.func @_upconv_kernel(%arg0: i32, %arg1: i32, %arg2: memref<1x1x64x256xbf16, #tpu.memory_space<vmem>>, %arg3: memref<1x1x64x256xbf16, #tpu.memory_space<vmem>>, %arg4: memref<1x1x64x256xbf16, #tpu.memory_space<vmem>>, %arg5: memref<256x128xbf16, #tpu.memory_space<vmem>>, %arg6: memref<1x128xf32, #tpu.memory_space<vmem>>, %arg7: memref<256x64xbf16, #tpu.memory_space<vmem>>, %arg8: memref<1x2x256x128xf32, #tpu.memory_space<vmem>>) attributes {dimension_semantics = [#tpu.dimension_semantics<parallel>, #tpu.dimension_semantics<parallel>], iteration_bounds = array<i64: 2, 4>, scalar_prefetch = 0 : i64, scratch_operands = 0 : i64, tpu.core_type = #tpu.core_type<tc>, window_params = [{transform_indices = @transform_0, window_bounds = array<i64: 1, 1, 64, 256>}, {transform_indices = @transform_1, window_bounds = array<i64: 1, 1, 64, 256>}, {transform_indices = @transform_2, window_bounds = array<i64: 1, 1, 64, 256>}, {pipeline_mode = #tpu.pipeline_mode<synchronous>, transform_indices = @transform_3, window_bounds = array<i64: 256, 128>}, {pipeline_mode = #tpu.pipeline_mode<synchronous>, transform_indices = @transform_4, window_bounds = array<i64: 1, 128>}, {pipeline_mode = #tpu.pipeline_mode<synchronous>, transform_indices = @transform_5, window_bounds = array<i64: 256, 64>}, {transform_indices = @transform_6, window_bounds = array<i64: 1, 2, 256, 128>}]} {
    %c0 = arith.constant 0 : index
    %c0_0 = arith.constant 0 : index
    %c0_1 = arith.constant 0 : index
    %c0_2 = arith.constant 0 : index
    %0 = vector.load %arg2[%c0, %c0_0, %c0_1, %c0_2] : memref<1x1x64x256xbf16, #tpu.memory_space<vmem>>, vector<1x1x64x256xbf16>
    %1 = vector.shape_cast %0 : vector<1x1x64x256xbf16> to vector<64x256xbf16>
    %2 = arith.extf %1 : vector<64x256xbf16> to vector<64x256xf32>
    %c0_3 = arith.constant 0 : index
    %c0_4 = arith.constant 0 : index
    %c0_5 = arith.constant 0 : index
    %c0_6 = arith.constant 0 : index
    %3 = vector.load %arg3[%c0_3, %c0_4, %c0_5, %c0_6] : memref<1x1x64x256xbf16, #tpu.memory_space<vmem>>, vector<1x1x64x256xbf16>
    %4 = vector.shape_cast %3 : vector<1x1x64x256xbf16> to vector<64x256xbf16>
    %5 = arith.extf %4 : vector<64x256xbf16> to vector<64x256xf32>
    %c0_7 = arith.constant 0 : index
    %c0_8 = arith.constant 0 : index
    %c0_9 = arith.constant 0 : index
    %c0_10 = arith.constant 0 : index
    %6 = vector.load %arg4[%c0_7, %c0_8, %c0_9, %c0_10] : memref<1x1x64x256xbf16, #tpu.memory_space<vmem>>, vector<1x1x64x256xbf16>
    %7 = vector.shape_cast %6 : vector<1x1x64x256xbf16> to vector<64x256xbf16>
    %8 = arith.extf %7 : vector<64x256xbf16> to vector<64x256xf32>
    %c0_11 = arith.constant 0 : index
    %c0_12 = arith.constant 0 : index
    %9 = vector.load %arg5[%c0_11, %c0_12] : memref<256x128xbf16, #tpu.memory_space<vmem>>, vector<256x128xbf16>
    %c0_13 = arith.constant 0 : index
    %c0_14 = arith.constant 0 : index
    %10 = vector.load %arg6[%c0_13, %c0_14] : memref<1x128xf32, #tpu.memory_space<vmem>>, vector<1x128xf32>
    %c0_15 = arith.constant 0 : index
    %c0_16 = arith.constant 0 : index
    %11 = vector.load %arg7[%c0_15, %c0_16] : memref<256x64xbf16, #tpu.memory_space<vmem>>, vector<256x64xbf16>
    %cst = arith.constant 2.500000e-01 : f32
    %12 = vector.broadcast %cst : f32 to vector<64x256xf32>
    %13 = arith.mulf %12, %2 : vector<64x256xf32>
    %cst_17 = arith.constant 7.500000e-01 : f32
    %14 = vector.broadcast %cst_17 : f32 to vector<64x256xf32>
    %15 = arith.mulf %14, %5 : vector<64x256xf32>
    %16 = arith.addf %13, %15 : vector<64x256xf32>
    %17 = arith.truncf %16 : vector<64x256xf32> to vector<64x256xbf16>
    %cst_18 = arith.constant 7.500000e-01 : f32
    %18 = vector.broadcast %cst_18 : f32 to vector<64x256xf32>
    %19 = arith.mulf %18, %5 : vector<64x256xf32>
    %cst_19 = arith.constant 2.500000e-01 : f32
    %20 = vector.broadcast %cst_19 : f32 to vector<64x256xf32>
    %21 = arith.mulf %20, %8 : vector<64x256xf32>
    %22 = arith.addf %19, %21 : vector<64x256xf32>
    %23 = arith.truncf %22 : vector<64x256xf32> to vector<64x256xbf16>
    %cst_20 = arith.constant dense<0.000000e+00> : vector<64x128xf32>
    %24 = tpu.matmul %17, %9, %cst_20 {dimension_numbers = #tpu.dot_dimension_numbers<[1], [0], [0], [1], [0, 0, 1, 1], [], []>} : vector<64x256xbf16>, vector<256x128xbf16>, vector<64x128xf32> -> vector<64x128xf32>
    %25 = vector.broadcast %10 : vector<1x128xf32> to vector<64x128xf32>
    %26 = arith.addf %24, %25 : vector<64x128xf32>
    %cst_21 = arith.constant dense<0.000000e+00> : vector<64x128xf32>
    %27 = tpu.matmul %23, %9, %cst_21 {dimension_numbers = #tpu.dot_dimension_numbers<[1], [0], [0], [1], [0, 0, 1, 1], [], []>} : vector<64x256xbf16>, vector<256x128xbf16>, vector<64x128xf32> -> vector<64x128xf32>
    %28 = vector.broadcast %10 : vector<1x128xf32> to vector<64x128xf32>
    %29 = arith.addf %27, %28 : vector<64x128xf32>
    %30 = arith.truncf %26 : vector<64x128xf32> to vector<64x128xbf16>
    %cst_22 = arith.constant dense<0.000000e+00> : vector<256x128xf32>
    %31 = tpu.matmul %11, %30, %cst_22 {dimension_numbers = #tpu.dot_dimension_numbers<[1], [0], [0], [1], [0, 0, 1, 1], [], []>} : vector<256x64xbf16>, vector<64x128xbf16>, vector<256x128xf32> -> vector<256x128xf32>
    %c0_23 = arith.constant 0 : index
    %c0_24 = arith.constant 0 : index
    %c0_25 = arith.constant 0 : index
    %c0_26 = arith.constant 0 : index
    %32 = vector.load %arg8[%c0_23, %c0_24, %c0_25, %c0_26] : memref<1x2x256x128xf32, #tpu.memory_space<vmem>>, vector<1x1x256x128xf32>
    %33 = vector.shape_cast %32 : vector<1x1x256x128xf32> to vector<256x128xf32>
    %34 = vector.shape_cast %31 : vector<256x128xf32> to vector<1x1x256x128xf32>
    tpu.vector_store %arg8[%c0_23, %c0_24, %c0_25, %c0_26], %34 {strides = array<i32>} : memref<1x2x256x128xf32, #tpu.memory_space<vmem>>, vector<1x1x256x128xf32>,
    %35 = arith.truncf %29 : vector<64x128xf32> to vector<64x128xbf16>
    %cst_27 = arith.constant dense<0.000000e+00> : vector<256x128xf32>
    %36 = tpu.matmul %11, %35, %cst_27 {dimension_numbers = #tpu.dot_dimension_numbers<[1], [0], [0], [1], [0, 0, 1, 1], [], []>} : vector<256x64xbf16>, vector<64x128xbf16>, vector<256x128xf32> -> vector<256x128xf32>
    %c0_28 = arith.constant 0 : index
    %c1 = arith.constant 1 : index
    %c0_29 = arith.constant 0 : index
    %c0_30 = arith.constant 0 : index
    %37 = vector.load %arg8[%c0_28, %c1, %c0_29, %c0_30] : memref<1x2x256x128xf32, #tpu.memory_space<vmem>>, vector<1x1x256x128xf32>
    %38 = vector.shape_cast %37 : vector<1x1x256x128xf32> to vector<256x128xf32>
    %39 = vector.shape_cast %36 : vector<256x128xf32> to vector<1x1x256x128xf32>
    tpu.vector_store %arg8[%c0_28, %c1, %c0_29, %c0_30], %39 {strides = array<i32>} : memref<1x2x256x128xf32, #tpu.memory_space<vmem>>, vector<1x1x256x128xf32>,
    return
  }
  func.func @transform_0(%arg0: i32, %arg1: i32) -> (i32, i32, i32, i32) {
    %c-1_i32 = arith.constant -1 : i32
    %0 = arith.addi %arg1, %c-1_i32 : i32
    %c0_i32 = arith.constant 0 : i32
    %c3_i32 = arith.constant 3 : i32
    %1 = arith.maxsi %c0_i32, %0 : i32
    %2 = arith.minsi %c3_i32, %1 : i32
    %c0_i32_0 = arith.constant 0 : i32
    %c0_i32_1 = arith.constant 0 : i32
    %c0_i32_2 = arith.constant 0 : i32
    return %arg0, %2, %c0_i32_0, %c0_i32_1 : i32, i32, i32, i32
  }
  func.func @transform_1(%arg0: i32, %arg1: i32) -> (i32, i32, i32, i32) {
    %c0_i32 = arith.constant 0 : i32
    %0 = arith.addi %arg1, %c0_i32 : i32
    %c0_i32_0 = arith.constant 0 : i32
    %c3_i32 = arith.constant 3 : i32
    %1 = arith.maxsi %c0_i32_0, %0 : i32
    %2 = arith.minsi %c3_i32, %1 : i32
    %c0_i32_1 = arith.constant 0 : i32
    %c0_i32_2 = arith.constant 0 : i32
    %c0_i32_3 = arith.constant 0 : i32
    return %arg0, %2, %c0_i32_1, %c0_i32_2 : i32, i32, i32, i32
  }
  func.func @transform_2(%arg0: i32, %arg1: i32) -> (i32, i32, i32, i32) {
    %c1_i32 = arith.constant 1 : i32
    %0 = arith.addi %arg1, %c1_i32 : i32
    %c0_i32 = arith.constant 0 : i32
    %c3_i32 = arith.constant 3 : i32
    %1 = arith.maxsi %c0_i32, %0 : i32
    %2 = arith.minsi %c3_i32, %1 : i32
    %c0_i32_0 = arith.constant 0 : i32
    %c0_i32_1 = arith.constant 0 : i32
    %c0_i32_2 = arith.constant 0 : i32
    return %arg0, %2, %c0_i32_0, %c0_i32_1 : i32, i32, i32, i32
  }
  func.func @transform_3(%arg0: i32, %arg1: i32) -> (i32, i32) {
    %c0_i32 = arith.constant 0 : i32
    %c0_i32_0 = arith.constant 0 : i32
    %c0_i32_1 = arith.constant 0 : i32
    return %c0_i32, %c0_i32_0 : i32, i32
  }
  func.func @transform_4(%arg0: i32, %arg1: i32) -> (i32, i32) {
    %c0_i32 = arith.constant 0 : i32
    %c0_i32_0 = arith.constant 0 : i32
    %c0_i32_1 = arith.constant 0 : i32
    return %c0_i32, %c0_i32_0 : i32, i32
  }
  func.func @transform_5(%arg0: i32, %arg1: i32) -> (i32, i32) {
    %c0_i32 = arith.constant 0 : i32
    %c0_i32_0 = arith.constant 0 : i32
    %c0_i32_1 = arith.constant 0 : i32
    return %c0_i32, %c0_i32_0 : i32, i32
  }
  func.func @transform_6(%arg0: i32, %arg1: i32) -> (i32, i32, i32, i32) {
    %c0_i32 = arith.constant 0 : i32
    %c0_i32_0 = arith.constant 0 : i32
    %c0_i32_1 = arith.constant 0 : i32
    return %arg0, %arg1, %c0_i32, %c0_i32_0 : i32, i32, i32, i32
  }
}

</mosaic_0001>

<llo_original>
// kernel: upconv2x2x2.1
$region0: #{upconv2x2x2.1}
  #allocation0 [shape = 'u32[]', space=smem, size = 0x4, offset = 0x4, fixed_abs, tag = 'smem constant byte address 0x4 - core index']
  #allocation1 [shape = 'u32[144,128]{1,0:T(1,128)}', space=vmem, size = 0x12000, scoped, tag = 'internal scratch']
  %s0 = inlined_call_operand.vmem [shape: bf16[2,4,64,256], index: 0, kind: input, shape index: {}, may-alias: {0,1,2}]
  %s1 = inlined_call_operand.vmem [shape: bf16[2,4,64,256], index: 1, kind: input, shape index: {}, may-alias: {0,1,2}]
  %s2 = inlined_call_operand.vmem [shape: bf16[2,4,64,256], index: 2, kind: input, shape index: {}, may-alias: {0,1,2}]
  %s3 = inlined_call_operand.vmem [shape: bf16[256,128], index: 3, kind: input, shape index: {}]
  %s4 = inlined_call_operand.hbm [shape: f32[1,128], index: 4, kind: input, shape index: {}]
  %s5 = inlined_call_operand.hbm [shape: bf16[256,64], index: 5, kind: input, shape index: {}]
  %s6 = inlined_call_operand.hbm [shape: f32[2,8,256,128], index: 6, kind: output, shape index: {}]
  %s7 = sld [smem:[#allocation0]]
  $region65: #{upconv2x2x2.1} parent=0
    _
  %s9 = ssub.s32 1, %s7
  %s10 = scalar_select 0, %s9, %s7
  $region1: #{upconv2x2x2.1} parent=0
    #allocation2 [shape = 'u8[512]{0}', space=vmem, size = 0x400, scoped, tag = 'input window, operand 4, single buffered']
    #allocation3 [shape = 's32[2]{0}', space=sflag, size = 0x8, scoped, tag = 'scoped memory for upconv2x2x2.1']
    #allocation4 [shape = 's32[2]{0}', space=sflag, size = 0x8, scoped, tag = 'scoped memory for upconv2x2x2.1']
    #allocation5 [shape = 'u8[65536]{0}', space=vmem, size = 0x10000, scoped, tag = 'input window, operand 5, single buffered']
    #allocation6 [shape = 's32[1]{0}', space=sflag, size = 0x4, scoped, tag = 'scoped memory for upconv2x2x2.1']
    #allocation7 [shape = 'u8[524288]{0}', space=vmem, size = 0x80000, scoped, tag = 'output window, operand 0']
    %11 = vsyncpa [#allocation3], 0
    %12 = vsyncpa [#allocation6], 0
    %13 = vsyncpa [#allocation4], 0
    %s14 = scalar_lea.sflag [#allocation4], 1
    %15 = vsyncpa %s14, 0
    loop: start=0, step=1, limit=10
    $region2: #{upconv2x2x2.1} parent=1 // loop_pre_header
      _
    $region3: #{upconv2x2x2.1} parent=1 // loop_header
      %s17 = sphi 0, %s21
      %p18 = scmp.ge.s32.totalorder %s17, 10
      %s24 = sphi 0, %s36
      %s25 = sphi 0, %s32
      %s26 = sphi 0, %s24
      %s27 = sphi 0, %s25
      %s28 = sphi 0, %s26
      %s29 = sphi 0, %s27
      %s51 = sphi 0, %s53
      %s54 = sphi 0, %s51
      %s55 = sphi 0, %s54
      %s71 = sphi 0, %s55
      %s87 = sphi 0, %s89
      %s90 = sphi 0, %s87
      %s91 = sphi 0, %s90
      %s107 = sphi 0, %s91
      %s125 = sphi 0, %s127
      %s128 = sphi 0, %s125
      %s129 = sphi 0, %s128
      %s145 = sphi 0, %s129
      %s149 = sphi 0, %s149
      %s151 = sphi 0, %s149
      %s152 = sphi 0, %s151
      %s166 = sphi 0, %s152
      %s170 = sphi 0, %s170
      %s172 = sphi 0, %s170
      %s173 = sphi 0, %s172
      %s187 = sphi 0, %s173
      %s191 = sphi 0, %s191
      %s193 = sphi 0, %s191
      %s194 = sphi 0, %s193
      %s208 = sphi 0, %s194
      %s216 = sphi 0, %s218
      %s219 = sphi 0, %s216
      %s220 = sphi 0, %s219
      %s236 = sphi 0, %s220
    $region4: #{upconv2x2x2.1} parent=1 // loop_header_branch
      %20 = sbr.rel (%p18) target = $region8
    $region5: #{upconv2x2x2.1} parent=1 // loop_body
      %s22 = ssub.s32 %s17, 1
      %s23 = ssub.s32 %s17, 2
      %s30 = sadd.s32 1, %s25
      %p31 = scmp.ge.s32.totalorder %s30, 4
      %s32 = scalar_select %p31, 0, %s30
      %s33 = sadd.s32 1, %s24
      %s34 = scalar_select %p31, %s33, %s24
      %p35 = scmp.ge.s32.totalorder %s34, 2
      %s36 = scalar_select %p35, 0, %s34
      %s37 = sadd.s32 %s25, 4294967295
      %p38 = scmp.gt.s32.totalorder %s37, 0
      %s39 = scalar_select %p38, %s37, 0
      %p40 = scmp.lt.s32.totalorder %s39, 3
      %s41 = scalar_select %p40, %s39, 3
      %s42 = sadd.s32 %s32, 4294967295
      %p43 = scmp.gt.s32.totalorder %s42, 0
      %s44 = scalar_select %p43, %s42, 0
      %p45 = scmp.lt.s32.totalorder %s44, 3
      %s46 = scalar_select %p45, %s44, 3
      %s47 = ssub.s32 %s24, %s36
      %s48 = ssub.s32 %s41, %s46
      %s49 = sor.u32 %s47, %s48
      %p50 = scmp.eq.s32.totalorder %s49, 0
      %s52 = sadd.s32 %s51, 1
      %s53 = scalar_select %p50, %s51, %s52
      %p56 = pneg %p50
      %p57 = scmp.eq.s32.totalorder %s17, 7
      %p58 = por %p56, %p57
      %p59 = scmp.ne.s32.totalorder %s51, %s54
      %p60 = scmp.eq.s32.totalorder %s17, 0
      %p61 = por %p59, %p60
      %p62 = scmp.ne.s32.totalorder %s51, %s54
      %p63 = scmp.eq.s32.totalorder %s22, 7
      %p64 = por %p62, %p63
      %p65 = scmp.ne.s32.totalorder %s54, %s55
      %p66 = scmp.eq.s32.totalorder %s22, 0
      %p67 = por %p65, %p66
      %p68 = scmp.ne.s32.totalorder %s54, %s55
      %p69 = scmp.eq.s32.totalorder %s23, 7
      %p70 = por %p68, %p69
      %p72 = scmp.ne.s32.totalorder %s55, %s71
      %p73 = scmp.eq.s32.totalorder %s23, 0
      %p74 = por %p72, %p73
      %p75 = scmp.gt.s32.totalorder %s25, 0
      %s76 = scalar_select %p75, %s25, 0
      %p77 = scmp.lt.s32.totalorder %s76, 3
      %s78 = scalar_select %p77, %s76, 3
      %p79 = scmp.gt.s32.totalorder %s32, 0
      %s80 = scalar_select %p79, %s32, 0
      %p81 = scmp.lt.s32.totalorder %s80, 3
      %s82 = scalar_select %p81, %s80, 3
      %s83 = ssub.s32 %s24, %s36
      %s84 = ssub.s32 %s78, %s82
      %s85 = sor.u32 %s83, %s84
      %p86 = scmp.eq.s32.totalorder %s85, 0
      %s88 = sadd.s32 %s87, 1
      %s89 = scalar_select %p86, %s87, %s88
      %p92 = pneg %p86
      %p93 = scmp.eq.s32.totalorder %s17, 7
      %p94 = por %p92, %p93
      %p95 = scmp.ne.s32.totalorder %s87, %s90
      %p96 = scmp.eq.s32.totalorder %s17, 0
      %p97 = por %p95, %p96
      %p98 = scmp.ne.s32.totalorder %s87, %s90
      %p99 = scmp.eq.s32.totalorder %s22, 7
      %p100 = por %p98, %p99
      %p101 = scmp.ne.s32.totalorder %s90, %s91
      %p102 = scmp.eq.s32.totalorder %s22, 0
      %p103 = por %p101, %p102
      %p104 = scmp.ne.s32.totalorder %s90, %s91
      %p105 = scmp.eq.s32.totalorder %s23, 7
      %p106 = por %p104, %p105
      %p108 = scmp.ne.s32.totalorder %s91, %s107
      %p109 = scmp.eq.s32.totalorder %s23, 0
      %p110 = por %p108, %p109
      %s111 = sadd.s32 %s25, 1
      %p112 = scmp.gt.s32.totalorder %s111, 0
      %s113 = scalar_select %p112, %s111, 0
      %p114 = scmp.lt.s32.totalorder %s113, 3
      %s115 = scalar_select %p114, %s113, 3
      %s116 = sadd.s32 %s32, 1
      %p117 = scmp.gt.s32.totalorder %s116, 0
      %s118 = scalar_select %p117, %s116, 0
      %p119 = scmp.lt.s32.totalorder %s118, 3
      %s120 = scalar_select %p119, %s118, 3
      %s121 = ssub.s32 %s24, %s36
      %s122 = ssub.s32 %s115, %s120
      %s123 = sor.u32 %s121, %s122
      %p124 = scmp.eq.s32.totalorder %s123, 0
      %s126 = sadd.s32 %s125, 1
      %s127 = scalar_select %p124, %s125, %s126
      %p130 = pneg %p124
      %p131 = scmp.eq.s32.totalorder %s17, 7
      %p132 = por %p130, %p131
      %p133 = scmp.ne.s32.totalorder %s125, %s128
      %p134 = scmp.eq.s32.totalorder %s17, 0
      %p135 = por %p133, %p134
      %p136 = scmp.ne.s32.totalorder %s125, %s128
      %p137 = scmp.eq.s32.totalorder %s22, 7
      %p138 = por %p136, %p137
      %p139 = scmp.ne.s32.totalorder %s128, %s129
      %p140 = scmp.eq.s32.totalorder %s22, 0
      %p141 = por %p139, %p140
      %p142 = scmp.ne.s32.totalorder %s128, %s129
      %p143 = scmp.eq.s32.totalorder %s23, 7
      %p144 = por %p142, %p143
      %p146 = scmp.ne.s32.totalorder %s129, %s145
      %p147 = scmp.eq.s32.totalorder %s23, 0
      %p148 = por %p146, %p147
      %s150 = sadd.s32 %s149, 1
      %p153 = scmp.eq.s32.totalorder %s17, 7
      %p154 = scmp.ne.s32.totalorder %s149, %s151
      %p155 = scmp.eq.s32.totalorder %s17, 0
      %p156 = por %p154, %p155
      %p157 = scmp.ne.s32.totalorder %s149, %s151
      %p158 = scmp.eq.s32.totalorder %s22, 7
      %p159 = por %p157, %p158
      %p160 = scmp.ne.s32.totalorder %s151, %s152
      %p161 = scmp.eq.s32.totalorder %s22, 0
      %p162 = por %p160, %p161
      %p163 = scmp.ne.s32.totalorder %s151, %s152
      %p164 = scmp.eq.s32.totalorder %s23, 7
      %p165 = por %p163, %p164
      %p167 = scmp.ne.s32.totalorder %s152, %s166
      %p168 = scmp.eq.s32.totalorder %s23, 0
      %p169 = por %p167, %p168
      %s171 = sadd.s32 %s170, 1
      %p174 = scmp.eq.s32.totalorder %s17, 7
      %p175 = scmp.ne.s32.totalorder %s170, %s172
      %p176 = scmp.eq.s32.totalorder %s17, 0
      %p177 = por %p175, %p176
      %p178 = scmp.ne.s32.totalorder %s170, %s172
      %p179 = scmp.eq.s32.totalorder %s22, 7
      %p180 = por %p178, %p179
      %p181 = scmp.ne.s32.totalorder %s172, %s173
      %p182 = scmp.eq.s32.totalorder %s22, 0
      %p183 = por %p181, %p182
      %p184 = scmp.ne.s32.totalorder %s172, %s173
      %p185 = scmp.eq.s32.totalorder %s23, 7
      %p186 = por %p184, %p185
      %p188 = scmp.ne.s32.totalorder %s173, %s187
      %p189 = scmp.eq.s32.totalorder %s23, 0
      %p190 = por %p188, %p189
      %s192 = sadd.s32 %s191, 1
      %p195 = scmp.eq.s32.totalorder %s17, 7
      %p196 = scmp.ne.s32.totalorder %s191, %s193
      %p197 = scmp.eq.s32.totalorder %s17, 0
      %p198 = por %p196, %p197
      %p199 = scmp.ne.s32.totalorder %s191, %s193
      %p200 = scmp.eq.s32.totalorder %s22, 7
      %p201 = por %p199, %p200
      %p202 = scmp.ne.s32.totalorder %s193, %s194
      %p203 = scmp.eq.s32.totalorder %s22, 0
      %p204 = por %p202, %p203
      %p205 = scmp.ne.s32.totalorder %s193, %s194
      %p206 = scmp.eq.s32.totalorder %s23, 7
      %p207 = por %p205, %p206
      %p209 = scmp.ne.s32.totalorder %s194, %s208
      %p210 = scmp.eq.s32.totalorder %s23, 0
      %p211 = por %p209, %p210
      %s212 = ssub.s32 %s24, %s36
      %s213 = ssub.s32 %s25, %s32
      %s214 = sor.u32 %s212, %s213
      %p215 = scmp.eq.s32.totalorder %s214, 0
      %s217 = sadd.s32 %s216, 1
      %s218 = scalar_select %p215, %s216, %s217
      %p221 = pneg %p215
      %p222 = scmp.eq.s32.totalorder %s17, 7
      %p223 = por %p221, %p222
      %p224 = scmp.ne.s32.totalorder %s216, %s219
      %p225 = scmp.eq.s32.totalorder %s17, 0
      %p226 = por %p224, %p225
      %p227 = scmp.ne.s32.totalorder %s216, %s219
      %p228 = scmp.eq.s32.totalorder %s22, 7
      %p229 = por %p227, %p228
      %p230 = scmp.ne.s32.totalorder %s219, %s220
      %p231 = scmp.eq.s32.totalorder %s22, 0
      %p232 = por %p230, %p231
      %p233 = scmp.ne.s32.totalorder %s219, %s220
      %p234 = scmp.eq.s32.totalorder %s23, 7
      %p235 = por %p233, %p234
      %p237 = scmp.ne.s32.totalorder %s220, %s236
      %p238 = scmp.eq.s32.totalorder %s23, 0
      %p239 = por %p237, %p238
      %p240 = scmp.le.s32.totalorder 1, %s17
      %p241 = scmp.lt.s32.totalorder %s17, 9
      %p242 = pnand %p240, %p241
      %p243 = pneg %p242
      // Predicated region
      $region9: #{upconv2x2x2.1} parent=5 // pred_check
        _
      $region10: #{upconv2x2x2.1} parent=5 // pred_check_branch
        %245 = sbr.rel (%p242) target = $region12
      $region11: #{upconv2x2x2.1} parent=5 // pred_region
        %s246 = ssub.s32 %s17, 1
        // Predicated region
        $region13: #{upconv2x2x2.1} parent=11 // pred_check
          %p247 = pneg %p162
        $region14: #{upconv2x2x2.1} parent=11 // pred_check_branch
          %249 = sbr.rel (%p247) target = $region16
        $region15: #{upconv2x2x2.1} parent=11 // pred_region
          _
        $region16: #{upconv2x2x2.1} parent=11 // pred_fallthru
          _
        // Predicated region
        $region17: #{upconv2x2x2.1} parent=11 // pred_check
          %p250 = pneg %p183
        $region18: #{upconv2x2x2.1} parent=11 // pred_check_branch
          %252 = sbr.rel (%p250) target = $region20
        $region19: #{upconv2x2x2.1} parent=11 // pred_region
          %s254 = ssub.s32 16, 16
          %255 = vsyncadd [#allocation3], %s254
          %s257 = sshll.u32 [#allocation2], 4
          %s258 = int_to_ptr.vmem [resolvable:$true] %s257
          %260 = dma.hbm_to_vmem [thread:$0]  %s4, 16, %s258, [#allocation3]
        $region20: #{upconv2x2x2.1} parent=11 // pred_fallthru
          _
        // Predicated region
        $region21: #{upconv2x2x2.1} parent=11 // pred_check
          %p261 = pneg %p204
        $region22: #{upconv2x2x2.1} parent=11 // pred_check_branch
          %263 = sbr.rel (%p261) target = $region24
        $region23: #{upconv2x2x2.1} parent=11 // pred_region
          %s265 = ssub.s32 2048, 2048
          %266 = vsyncadd [#allocation6], %s265
          %s267 = sshll.u32 [#allocation5], 4
          %s268 = int_to_ptr.vmem [resolvable:$true] %s267
          %273 = dma.hbm_to_vmem [thread:$0]  %s5, 2048, %s268, [#allocation6], 64, 64, 4
        $region24: #{upconv2x2x2.1} parent=11 // pred_fallthru
          _
      $region12: #{upconv2x2x2.1} parent=5 // pred_fallthru
        _
      %p274 = scmp.lt.s32.totalorder %s17, 8
      // Predicated region
      $region25: #{upconv2x2x2.1} parent=5 // pred_check
        %p275 = pneg %p274
      $region26: #{upconv2x2x2.1} parent=5 // pred_check_branch
        %277 = sbr.rel (%p275) target = $region28
      $region27: #{upconv2x2x2.1} parent=5 // pred_region
        // Predicated region
        $region29: #{upconv2x2x2.1} parent=27 // pred_check
          %p278 = pneg %p61
        $region30: #{upconv2x2x2.1} parent=27 // pred_check_branch
          %280 = sbr.rel (%p278) target = $region32
        $region31: #{upconv2x2x2.1} parent=27 // pred_region
          %s281 = sadd.s32 %s25, 4294967295
          %p282 = scmp.gt.s32.totalorder %s281, 0
          %s283 = scalar_select %p282, %s281, 0
          %p284 = scmp.lt.s32.totalorder %s283, 3
          %s285 = scalar_select %p284, %s283, 3
          %p286 = scmp.lt.s32.totalorder %s24, 1
          %s287 = scalar_select %p286, %s24, 1
          %p288 = scmp.lt.s32.totalorder %s285, 3
          %s289 = scalar_select %p288, %s285, 3
          %s290 = smul.addr %s289, 16
          %s291 = smul.addr %s287, 64
          %s292 = sadd.s32 %s290, %s291
          %s293 = smul.addr %s292, 4
          %s294 = scalar_lea.vmem %s0, %s293
          %s295 = sadd.s32 %s25, 4294967295
          %p296 = scmp.gt.s32.totalorder %s295, 0
          %s297 = scalar_select %p296, %s295, 0
          %p298 = scmp.lt.s32.totalorder %s297, 3
          %s299 = scalar_select %p298, %s297, 3
        $region32: #{upconv2x2x2.1} parent=27 // pred_fallthru
          _
        // Predicated region
        $region33: #{upconv2x2x2.1} parent=27 // pred_check
          %p300 = pneg %p97
        $region34: #{upconv2x2x2.1} parent=27 // pred_check_branch
          %302 = sbr.rel (%p300) target = $region36
        $region35: #{upconv2x2x2.1} parent=27 // pred_region
          %p303 = scmp.gt.s32.totalorder %s25, 0
          %s304 = scalar_select %p303, %s25, 0
          %p305 = scmp.lt.s32.totalorder %s304, 3
          %s306 = scalar_select %p305, %s304, 3
          %p307 = scmp.lt.s32.totalorder %s24, 1
          %s308 = scalar_select %p307, %s24, 1
          %p309 = scmp.lt.s32.totalorder %s306, 3
          %s310 = scalar_select %p309, %s306, 3
          %s311 = smul.addr %s310, 16
          %s312 = smul.addr %s308, 64
          %s313 = sadd.s32 %s311, %s312
          %s314 = smul.addr %s313, 4
          %s315 = scalar_lea.vmem %s1, %s314
          %p316 = scmp.gt.s32.totalorder %s25, 0
          %s317 = scalar_select %p316, %s25, 0
          %p318 = scmp.lt.s32.totalorder %s317, 3
          %s319 = scalar_select %p318, %s317, 3
        $region36: #{upconv2x2x2.1} parent=27 // pred_fallthru
          _
        // Predicated region
        $region37: #{upconv2x2x2.1} parent=27 // pred_check
          %p320 = pneg %p135
        $region38: #{upconv2x2x2.1} parent=27 // pred_check_branch
          %322 = sbr.rel (%p320) target = $region40
        $region39: #{upconv2x2x2.1} parent=27 // pred_region
          %s323 = sadd.s32 %s25, 1
          %p324 = scmp.gt.s32.totalorder %s323, 0
          %s325 = scalar_select %p324, %s323, 0
          %p326 = scmp.lt.s32.totalorder %s325, 3
          %s327 = scalar_select %p326, %s325, 3
          %p328 = scmp.lt.s32.totalorder %s24, 1
          %s329 = scalar_select %p328, %s24, 1
          %p330 = scmp.lt.s32.totalorder %s327, 3
          %s331 = scalar_select %p330, %s327, 3
          %s332 = smul.addr %s331, 16
          %s333 = smul.addr %s329, 64
          %s334 = sadd.s32 %s332, %s333
          %s335 = smul.addr %s334, 4
          %s336 = scalar_lea.vmem %s2, %s335
          %s337 = sadd.s32 %s25, 1
          %p338 = scmp.gt.s32.totalorder %s337, 0
          %s339 = scalar_select %p338, %s337, 0
          %p340 = scmp.lt.s32.totalorder %s339, 3
          %s341 = scalar_select %p340, %s339, 3
        $region40: #{upconv2x2x2.1} parent=27 // pred_fallthru
          _
      $region28: #{upconv2x2x2.1} parent=5 // pred_fallthru
        _
      %p342 = scmp.le.s32.totalorder 1, %s17
      %p343 = scmp.lt.s32.totalorder %s17, 9
      %p344 = pnand %p342, %p343
      %p345 = pneg %p344
      // Predicated region
      $region41: #{upconv2x2x2.1} parent=5 // pred_check
        _
      $region42: #{upconv2x2x2.1} parent=5 // pred_check_branch
        %347 = sbr.rel (%p344) target = $region44
      $region43: #{upconv2x2x2.1} parent=5 // pred_region
        %s348 = ssub.s32 %s17, 1
        // Predicated region
        $region45: #{upconv2x2x2.1} parent=43 // pred_check
          %p349 = pneg %p183
        $region46: #{upconv2x2x2.1} parent=43 // pred_check_branch
          %351 = sbr.rel (%p349) target = $region48
        $region47: #{upconv2x2x2.1} parent=43 // pred_region
          %352 = dma.done [#allocation3], 16
        $region48: #{upconv2x2x2.1} parent=43 // pred_fallthru
          _
        // Predicated region
        $region49: #{upconv2x2x2.1} parent=43 // pred_check
          %p353 = pneg %p204
        $region50: #{upconv2x2x2.1} parent=43 // pred_check_branch
          %355 = sbr.rel (%p353) target = $region52
        $region51: #{upconv2x2x2.1} parent=43 // pred_region
          %356 = dma.done [#allocation6], 2048
        $region52: #{upconv2x2x2.1} parent=43 // pred_fallthru
          _
        %s357 = sadd.s32 %s27, 4294967295
        %p358 = scmp.gt.s32.totalorder %s357, 0
        %s359 = scalar_select %p358, %s357, 0
        %p360 = scmp.lt.s32.totalorder %s359, 3
        %s361 = scalar_select %p360, %s359, 3
        %p362 = scmp.lt.s32.totalorder %s26, 1
        %s363 = scalar_select %p362, %s26, 1
        %p364 = scmp.lt.s32.totalorder %s361, 3
        %s365 = scalar_select %p364, %s361, 3
        %s366 = smul.addr %s365, 16
        %s367 = smul.addr %s363, 64
        %s368 = sadd.s32 %s366, %s367
        %s369 = smul.addr %s368, 4
        %s370 = scalar_lea.vmem %s0, %s369
        %p371 = pneg %p67
        %p372 = pneg %p64
        %p373 = scmp.gt.s32.totalorder %s27, 0
        %s374 = scalar_select %p373, %s27, 0
        %p375 = scmp.lt.s32.totalorder %s374, 3
        %s376 = scalar_select %p375, %s374, 3
        %p377 = scmp.lt.s32.totalorder %s26, 1
        %s378 = scalar_select %p377, %s26, 1
        %p379 = scmp.lt.s32.totalorder %s376, 3
        %s380 = scalar_select %p379, %s376, 3
        %s381 = smul.addr %s380, 16
        %s382 = smul.addr %s378, 64
        %s383 = sadd.s32 %s381, %s382
        %s384 = smul.addr %s383, 4
        %s385 = scalar_lea.vmem %s1, %s384
        %p386 = pneg %p103
        %p387 = pneg %p100
        %s388 = sadd.s32 %s27, 1
        %p389 = scmp.gt.s32.totalorder %s388, 0
        %s390 = scalar_select %p389, %s388, 0
        %p391 = scmp.lt.s32.totalorder %s390, 3
        %s392 = scalar_select %p391, %s390, 3
        %p393 = scmp.lt.s32.totalorder %s26, 1
        %s394 = scalar_select %p393, %s26, 1
        %p395 = scmp.lt.s32.totalorder %s392, 3
        %s396 = scalar_select %p395, %s392, 3
        %s397 = smul.addr %s396, 16
        %s398 = smul.addr %s394, 64
        %s399 = sadd.s32 %s397, %s398
        %s400 = smul.addr %s399, 4
        %s401 = scalar_lea.vmem %s2, %s400
        %p402 = pneg %p141
        %p403 = pneg %p138
        %p404 = pneg %p162
        %p405 = pneg %p159
        %p406 = pneg %p183
        %p407 = pneg %p180
        %p408 = pneg %p204
        %p409 = pneg %p201
        %p410 = pneg %p232
        %p411 = pneg %p229
        %s412 = sand.u32 %s219, 1
        %s413 = scalar_lea.sflag [#allocation4], %s412
        %s414 = sand.u32 %s219, 1
        %s415 = smul.addr %s414, 512
        %s416 = scalar_lea.vmem [#allocation7], %s415
        %s417 = sadd.s32 %s27, 4294967295
        %p418 = scmp.gt.s32.totalorder %s417, 0
        %s419 = scalar_select %p418, %s417, 0
        %p420 = scmp.lt.s32.totalorder %s419, 3
        %s421 = scalar_select %p420, %s419, 3
        %p422 = scmp.lt.s32.totalorder %s26, 1
        %s423 = scalar_select %p422, %s26, 1
        %p424 = scmp.lt.s32.totalorder %s421, 3
        %s425 = scalar_select %p424, %s421, 3
        %s426 = smul.addr %s425, 16
        %s427 = smul.addr %s423, 64
        %s428 = sadd.s32 %s426, %s427
        %s429 = smul.addr %s428, 4
        %s430 = scalar_lea.vmem %s0, %s429
        %s431 = sadd.s32 %s27, 4294967295
        %p432 = scmp.gt.s32.totalorder %s431, 0
        %s433 = scalar_select %p432, %s431, 0
        %p434 = scmp.lt.s32.totalorder %s433, 3
        %s435 = scalar_select %p434, %s433, 3
        %p436 = scmp.gt.s32.totalorder %s27, 0
        %s437 = scalar_select %p436, %s27, 0
        %p438 = scmp.lt.s32.totalorder %s437, 3
        %s439 = scalar_select %p438, %s437, 3
        %p440 = scmp.lt.s32.totalorder %s26, 1
        %s441 = scalar_select %p440, %s26, 1
        %p442 = scmp.lt.s32.totalorder %s439, 3
        %s443 = scalar_select %p442, %s439, 3
        %s444 = smul.addr %s443, 16
        %s445 = smul.addr %s441, 64
        %s446 = sadd.s32 %s444, %s445
        %s447 = smul.addr %s446, 4
        %s448 = scalar_lea.vmem %s1, %s447
        %p449 = scmp.gt.s32.totalorder %s27, 0
        %s450 = scalar_select %p449, %s27, 0
        %p451 = scmp.lt.s32.totalorder %s450, 3
        %s452 = scalar_select %p451, %s450, 3
        %s453 = sadd.s32 %s27, 1
        %p454 = scmp.gt.s32.totalorder %s453, 0
        %s455 = scalar_select %p454, %s453, 0
        %p456 = scmp.lt.s32.totalorder %s455, 3
        %s457 = scalar_select %p456, %s455, 3
        %p458 = scmp.lt.s32.totalorder %s26, 1
        %s459 = scalar_select %p458, %s26, 1
        %p460 = scmp.lt.s32.totalorder %s457, 3
        %s461 = scalar_select %p460, %s457, 3
        %s462 = smul.addr %s461, 16
        %s463 = smul.addr %s459, 64
        %s464 = sadd.s32 %s462, %s463
        %s465 = smul.addr %s464, 4
        %s466 = scalar_lea.vmem %s2, %s465
        %s467 = sadd.s32 %s27, 1
        %p468 = scmp.gt.s32.totalorder %s467, 0
        %s469 = scalar_select %p468, %s467, 0
        %p470 = scmp.lt.s32.totalorder %s469, 3
        %s471 = scalar_select %p470, %s469, 3
        %s472 = smul.u32 2, %s27
        %v474 = vld [vmem:[%s430] sm:$0xff]
        %v475 = vld [vmem:[%s430 + $0x8] sm:$0xff]
        %v476 = vld [vmem:[%s430 + $0x10] sm:$0xff]
        %v477 = vld [vmem:[%s430 + $0x18] sm:$0xff]
        %v478 = vld [vmem:[%s430 + $0x20] sm:$0xff]
        %v479 = vld [vmem:[%s430 + $0x28] sm:$0xff]
        %v480 = vld [vmem:[%s430 + $0x30] sm:$0xff]
        %v481 = vld [vmem:[%s430 + $0x38] sm:$0xff]
        %v482 = vunpack.c.l.bf16 %v474
        %v483 = vunpack.c.h.bf16 %v474
        %v484 = vunpack.c.l.bf16 %v475
        %v485 = vunpack.c.h.bf16 %v475
        %v486 = vunpack.c.l.bf16 %v476
        %v487 = vunpack.c.h.bf16 %v476
        %v488 = vunpack.c.l.bf16 %v477
        %v489 = vunpack.c.h.bf16 %v477
        %v490 = vunpack.c.l.bf16 %v478
        %v491 = vunpack.c.h.bf16 %v478
        %v492 = vunpack.c.l.bf16 %v479
        %v493 = vunpack.c.h.bf16 %v479
        %v494 = vunpack.c.l.bf16 %v480
        %v495 = vunpack.c.h.bf16 %v480
        %v496 = vunpack.c.l.bf16 %v481
        %v497 = vunpack.c.h.bf16 %v481
        %v498 = vld [vmem:[%s448] sm:$0xff]
        %v499 = vld [vmem:[%s448 + $0x8] sm:$0xff]
        %v500 = vld [vmem:[%s448 + $0x10] sm:$0xff]
        %v501 = vld [vmem:[%s448 + $0x18] sm:$0xff]
        %v502 = vld [vmem:[%s448 + $0x20] sm:$0xff]
        %v503 = vld [vmem:[%s448 + $0x28] sm:$0xff]
        %v504 = vld [vmem:[%s448 + $0x30] sm:$0xff]
        %v505 = vld [vmem:[%s448 + $0x38] sm:$0xff]
        %v506 = vunpack.c.l.bf16 %v498
        %v507 = vunpack.c.h.bf16 %v498
        %v508 = vunpack.c.l.bf16 %v499
        %v509 = vunpack.c.h.bf16 %v499
        %v510 = vunpack.c.l.bf16 %v500
        %v511 = vunpack.c.h.bf16 %v500
        %v512 = vunpack.c.l.bf16 %v501
        %v513 = vunpack.c.h.bf16 %v501
        %v514 = vunpack.c.l.bf16 %v502
        %v515 = vunpack.c.h.bf16 %v502
        %v516 = vunpack.c.l.bf16 %v503
        %v517 = vunpack.c.h.bf16 %v503
        %v518 = vunpack.c.l.bf16 %v504
        %v519 = vunpack.c.h.bf16 %v504
        %v520 = vunpack.c.l.bf16 %v505
        %v521 = vunpack.c.h.bf16 %v505
        %v522 = vld [vmem:[%s466] sm:$0xff]
        %v523 = vld [vmem:[%s466 + $0x8] sm:$0xff]
        %v524 = vld [vmem:[%s466 + $0x10] sm:$0xff]
        %v525 = vld [vmem:[%s466 + $0x18] sm:$0xff]
        %v526 = vld [vmem:[%s466 + $0x20] sm:$0xff]
        %v527 = vld [vmem:[%s466 + $0x28] sm:$0xff]
        %v528 = vld [vmem:[%s466 + $0x30] sm:$0xff]
        %v529 = vld [vmem:[%s466 + $0x38] sm:$0xff]
        %v530 = vunpack.c.l.bf16 %v522
        %v531 = vunpack.c.h.bf16 %v522
        %v532 = vunpack.c.l.bf16 %v523
        %v533 = vunpack.c.h.bf16 %v523
        %v534 = vunpack.c.l.bf16 %v524
        %v535 = vunpack.c.h.bf16 %v524
        %v536 = vunpack.c.l.bf16 %v525
        %v537 = vunpack.c.h.bf16 %v525
        %v538 = vunpack.c.l.bf16 %v526
        %v539 = vunpack.c.h.bf16 %v526
        %v540 = vunpack.c.l.bf16 %v527
        %v541 = vunpack.c.h.bf16 %v527
        %v542 = vunpack.c.l.bf16 %v528
        %v543 = vunpack.c.h.bf16 %v528
        %v544 = vunpack.c.l.bf16 %v529
        %v545 = vunpack.c.h.bf16 %v529
        %v546 = vld [vmem:[%s3] sm:$0xf]
        %v547 = vld [vmem:[%s3 + $0x4] sm:$0xf]
        %v548 = vld [vmem:[%s3 + $0x8] sm:$0xf]
        %v549 = vld [vmem:[%s3 + $0xc] sm:$0xf]
        %v550 = vld [vmem:[%s3 + $0x10] sm:$0xf]
        %v551 = vld [vmem:[%s3 + $0x14] sm:$0xf]
        %v552 = vld [vmem:[%s3 + $0x18] sm:$0xf]
        %v553 = vld [vmem:[%s3 + $0x1c] sm:$0xf]
        %v554 = vld [vmem:[%s3 + $0x20] sm:$0xf]
        %v555 = vld [vmem:[%s3 + $0x24] sm:$0xf]
        %v556 = vld [vmem:[%s3 + $0x28] sm:$0xf]
        %v557 = vld [vmem:[%s3 + $0x2c] sm:$0xf]
        %v558 = vld [vmem:[%s3 + $0x30] sm:$0xf]
        %v559 = vld [vmem:[%s3 + $0x34] sm:$0xf]
        %v560 = vld [vmem:[%s3 + $0x38] sm:$0xf]
        %v561 = vld [vmem:[%s3 + $0x3c] sm:$0xf]
        %v562 = vld [vmem:[%s3 + $0x40] sm:$0xf]
        %v563 = vld [vmem:[%s3 + $0x44] sm:$0xf]
        %v564 = vld [vmem:[%s3 + $0x48] sm:$0xf]
        %v565 = vld [vmem:[%s3 + $0x4c] sm:$0xf]
        %v566 = vld [vmem:[%s3 + $0x50] sm:$0xf]
        %v567 = vld [vmem:[%s3 + $0x54] sm:$0xf]
        %v568 = vld [vmem:[%s3 + $0x58] sm:$0xf]
        %v569 = vld [vmem:[%s3 + $0x5c] sm:$0xf]
        %v570 = vld [vmem:[%s3 + $0x60] sm:$0xf]
        %v571 = vld [vmem:[%s3 + $0x64] sm:$0xf]
        %v572 = vld [vmem:[%s3 + $0x68] sm:$0xf]
        %v573 = vld [vmem:[%s3 + $0x6c] sm:$0xf]
        %v574 = vld [vmem:[%s3 + $0x70] sm:$0xf]
        %v575 = vld [vmem:[%s3 + $0x74] sm:$0xf]
        %v576 = vld [vmem:[%s3 + $0x78] sm:$0xf]
        %v577 = vld [vmem:[%s3 + $0x7c] sm:$0xf]
        %v578 = vld [vmem:[#allocation2] sm:$0x1]
        %v579 = vld [vmem:[#allocation5] sm:$0xf]
        %v580 = vld [vmem:[#allocation5 + $0x4] sm:$0xf]
        %v581 = vld [vmem:[#allocation5 + $0x8] sm:$0xf]
        %v582 = vld [vmem:[#allocation5 + $0xc] sm:$0xf]
        %v583 = vld [vmem:[#allocation5 + $0x10] sm:$0xf]
        %v584 = vld [vmem:[#allocation5 + $0x14] sm:$0xf]
        %v585 = vld [vmem:[#allocation5 + $0x18] sm:$0xf]
        %v586 = vld [vmem:[#allocation5 + $0x1c] sm:$0xf]
        %v587 = vld [vmem:[#allocation5 + $0x20] sm:$0xf]
        %v588 = vld [vmem:[#allocation5 + $0x24] sm:$0xf]
        %v589 = vld [vmem:[#allocation5 + $0x28] sm:$0xf]
        %v590 = vld [vmem:[#allocation5 + $0x2c] sm:$0xf]
        %v591 = vld [vmem:[#allocation5 + $0x30] sm:$0xf]
        %v592 = vld [vmem:[#allocation5 + $0x34] sm:$0xf]
        %v593 = vld [vmem:[#allocation5 + $0x38] sm:$0xf]
        %v594 = vld [vmem:[#allocation5 + $0x3c] sm:$0xf]
        %v595 = vld [vmem:[#allocation5 + $0x40] sm:$0xf]
        %v596 = vld [vmem:[#allocation5 + $0x44] sm:$0xf]
        %v597 = vld [vmem:[#allocation5 + $0x48] sm:$0xf]
        %v598 = vld [vmem:[#allocation5 + $0x4c] sm:$0xf]
        %v599 = vld [vmem:[#allocation5 + $0x50] sm:$0xf]
        %v600 = vld [vmem:[#allocation5 + $0x54] sm:$0xf]
        %v601 = vld [vmem:[#allocation5 + $0x58] sm:$0xf]
        %v602 = vld [vmem:[#allocation5 + $0x5c] sm:$0xf]
        %v603 = vld [vmem:[#allocation5 + $0x60] sm:$0xf]
        %v604 = vld [vmem:[#allocation5 + $0x64] sm:$0xf]
        %v605 = vld [vmem:[#allocation5 + $0x68] sm:$0xf]
        %v606 = vld [vmem:[#allocation5 + $0x6c] sm:$0xf]
        %v607 = vld [vmem:[#allocation5 + $0x70] sm:$0xf]
        %v608 = vld [vmem:[#allocation5 + $0x74] sm:$0xf]
        %v609 = vld [vmem:[#allocation5 + $0x78] sm:$0xf]
        %v610 = vld [vmem:[#allocation5 + $0x7c] sm:$0xf]
        %v611 = vmul.f32 %v482, 0.25
        %v612 = vmul.f32 %v483, 0.25
        %v613 = vmul.f32 %v484, 0.25
        %v614 = vmul.f32 %v485, 0.25
        %v615 = vmul.f32 %v486, 0.25
        %v616 = vmul.f32 %v487, 0.25
        %v617 = vmul.f32 %v488, 0.25
        %v618 = vmul.f32 %v489, 0.25
        %v619 = vmul.f32 %v490, 0.25
        %v620 = vmul.f32 %v491, 0.25
        %v621 = vmul.f32 %v492, 0.25
        %v622 = vmul.f32 %v493, 0.25
        %v623 = vmul.f32 %v494, 0.25
        %v624 = vmul.f32 %v495, 0.25
        %v625 = vmul.f32 %v496, 0.25
        %v626 = vmul.f32 %v497, 0.25
        %v627 = vmul.f32 %v506, 0.75
        %v628 = vmul.f32 %v507, 0.75
        %v629 = vmul.f32 %v508, 0.75
        %v630 = vmul.f32 %v509, 0.75
        %v631 = vmul.f32 %v510, 0.75
        %v632 = vmul.f32 %v511, 0.75
        %v633 = vmul.f32 %v512, 0.75
        %v634 = vmul.f32 %v513, 0.75
        %v635 = vmul.f32 %v514, 0.75
        %v636 = vmul.f32 %v515, 0.75
        %v637 = vmul.f32 %v516, 0.75
        %v638 = vmul.f32 %v517, 0.75
        %v639 = vmul.f32 %v518, 0.75
        %v640 = vmul.f32 %v519, 0.75
        %v641 = vmul.f32 %v520, 0.75
        %v642 = vmul.f32 %v521, 0.75
        %v643 = vadd.f32 %v611, %v627
        %v644 = vadd.f32 %v612, %v628
        %v645 = vadd.f32 %v613, %v629
        %v646 = vadd.f32 %v614, %v630
        %v647 = vadd.f32 %v615, %v631
        %v648 = vadd.f32 %v616, %v632
        %v649 = vadd.f32 %v617, %v633
        %v650 = vadd.f32 %v618, %v634
        %v651 = vadd.f32 %v619, %v635
        %v652 = vadd.f32 %v620, %v636
        %v653 = vadd.f32 %v621, %v637
        %v654 = vadd.f32 %v622, %v638
        %v655 = vadd.f32 %v623, %v639
        %v656 = vadd.f32 %v624, %v640
        %v657 = vadd.f32 %v625, %v641
        %v658 = vadd.f32 %v626, %v642
        %v659 = vpack.c.bf16 %v645, %v643
        %v660 = vpack.c.bf16 %v646, %v644
        %v661 = vpack.c.bf16 %v649, %v647
        %v662 = vpack.c.bf16 %v650, %v648
        %v663 = vpack.c.bf16 %v653, %v651
        %v664 = vpack.c.bf16 %v654, %v652
        %v665 = vpack.c.bf16 %v657, %v655
        %v666 = vpack.c.bf16 %v658, %v656
        %v667 = vmul.f32 %v530, 0.25
        %v668 = vmul.f32 %v531, 0.25
        %v669 = vmul.f32 %v532, 0.25
        %v670 = vmul.f32 %v533, 0.25
        %v671 = vmul.f32 %v534, 0.25
        %v672 = vmul.f32 %v535, 0.25
        %v673 = vmul.f32 %v536, 0.25
        %v674 = vmul.f32 %v537, 0.25
        %v675 = vmul.f32 %v538, 0.25
        %v676 = vmul.f32 %v539, 0.25
        %v677 = vmul.f32 %v540, 0.25
        %v678 = vmul.f32 %v541, 0.25
        %v679 = vmul.f32 %v542, 0.25
        %v680 = vmul.f32 %v543, 0.25
        %v681 = vmul.f32 %v544, 0.25
        %v682 = vmul.f32 %v545, 0.25
        %v683 = vadd.f32 %v627, %v667
        %v684 = vadd.f32 %v628, %v668
        %v685 = vadd.f32 %v629, %v669
        %v686 = vadd.f32 %v630, %v670
        %v687 = vadd.f32 %v631, %v671
        %v688 = vadd.f32 %v632, %v672
        %v689 = vadd.f32 %v633, %v673
        %v690 = vadd.f32 %v634, %v674
        %v691 = vadd.f32 %v635, %v675
        %v692 = vadd.f32 %v636, %v676
        %v693 = vadd.f32 %v637, %v677
        %v694 = vadd.f32 %v638, %v678
        %v695 = vadd.f32 %v639, %v679
        %v696 = vadd.f32 %v640, %v680
        %v697 = vadd.f32 %v641, %v681
        %v698 = vadd.f32 %v642, %v682
        %v699 = vpack.c.bf16 %v685, %v683
        %v700 = vpack.c.bf16 %v686, %v684
        %v701 = vpack.c.bf16 %v689, %v687
        %v702 = vpack.c.bf16 %v690, %v688
        %v703 = vpack.c.bf16 %v693, %v691
        %v704 = vpack.c.bf16 %v694, %v692
        %v705 = vpack.c.bf16 %v697, %v695
        %v706 = vpack.c.bf16 %v698, %v696
        %v708 = vlaneseq
        %v709 = vshrl.u32 %v708, 7
        %v710 = vsub.s32 0, %v709
        %v711 = vrot.slane %v578, %v710
        %v745 = vunpack.c.l.b16 %v546
        %v746 = vunpack.c.l.b16 %v547
        %v747 = vunpack.c.l.b16 %v548
        %v748 = vunpack.c.l.b16 %v549
        %v749 = vunpack.c.l.b16 %v550
        %v750 = vunpack.c.l.b16 %v551
        %v751 = vunpack.c.l.b16 %v552
        %v752 = vunpack.c.l.b16 %v553
        %v753 = vunpack.c.l.b16 %v554
        %v754 = vunpack.c.l.b16 %v555
        %v755 = vunpack.c.l.b16 %v556
        %v756 = vunpack.c.l.b16 %v557
        %v757 = vunpack.c.l.b16 %v558
        %v758 = vunpack.c.l.b16 %v559
        %v759 = vunpack.c.l.b16 %v560
        %v760 = vunpack.c.l.b16 %v561
        %v761 = vunpack.c.l.b16 %v562
        %v762 = vunpack.c.l.b16 %v563
        %v763 = vunpack.c.l.b16 %v564
        %v764 = vunpack.c.l.b16 %v565
        %v765 = vunpack.c.l.b16 %v566
        %v766 = vunpack.c.l.b16 %v567
        %v767 = vunpack.c.l.b16 %v568
        %v768 = vunpack.c.l.b16 %v569
        %v769 = vunpack.c.l.b16 %v570
        %v770 = vunpack.c.l.b16 %v571
        %v771 = vunpack.c.l.b16 %v572
        %v772 = vunpack.c.l.b16 %v573
        %v773 = vunpack.c.l.b16 %v574
        %v774 = vunpack.c.l.b16 %v575
        %v775 = vunpack.c.l.b16 %v576
        %v776 = vunpack.c.l.b16 %v577
        %v777 = vpack.c.b16 %v746, %v745
        %v778 = vpack.c.b16 %v748, %v747
        %v779 = vpack.c.b16 %v750, %v749
        %v780 = vpack.c.b16 %v752, %v751
        %v781 = vpack.c.b16 %v754, %v753
        %v782 = vpack.c.b16 %v756, %v755
        %v783 = vpack.c.b16 %v758, %v757
        %v784 = vpack.c.b16 %v760, %v759
        %v785 = vpack.c.b16 %v762, %v761
        %v786 = vpack.c.b16 %v764, %v763
        %v787 = vpack.c.b16 %v766, %v765
        %v788 = vpack.c.b16 %v768, %v767
        %v789 = vpack.c.b16 %v770, %v769
        %v790 = vpack.c.b16 %v772, %v771
        %v791 = vpack.c.b16 %v774, %v773
        %v792 = vpack.c.b16 %v776, %v775
        %809 = vmatprep.subr.bf16.mxu0 0
        %810 = vmatpush1.bf16.msra.mxu0 %v777
        %811 = vmatprep.subr.bf16.mxu0 0
        %812 = vmatpush1.bf16.msra.mxu0 %v778
        %813 = vmatprep.subr.bf16.mxu0 0
        %814 = vmatpush1.bf16.msra.mxu0 %v779
        %815 = vmatprep.subr.bf16.mxu0 0
        %816 = vmatpush1.bf16.msra.mxu0 %v780
        %817 = vmatprep.subr.bf16.mxu0 0
        %818 = vmatpush1.bf16.msra.mxu0 %v781
        %819 = vmatprep.subr.bf16.mxu0 0
        %820 = vmatpush1.bf16.msra.mxu0 %v782
        %821 = vmatprep.subr.bf16.mxu0 0
        %822 = vmatpush1.bf16.msra.mxu0 %v783
        %823 = vmatprep.subr.bf16.mxu0 0
        %824 = vmatpush1.bf16.msra.mxu0 %v784
        %825 = vmatprep.subr.bf16.mxu0 0
        %826 = vmatpush1.bf16.msra.mxu0 %v785
        %827 = vmatprep.subr.bf16.mxu0 0
        %828 = vmatpush1.bf16.msra.mxu0 %v786
        %829 = vmatprep.subr.bf16.mxu0 0
        %830 = vmatpush1.bf16.msra.mxu0 %v787
        %831 = vmatprep.subr.bf16.mxu0 0
        %832 = vmatpush1.bf16.msra.mxu0 %v788
        %833 = vmatprep.subr.bf16.mxu0 0
        %834 = vmatpush1.bf16.msra.mxu0 %v789
        %835 = vmatprep.subr.bf16.mxu0 0
        %836 = vmatpush1.bf16.msra.mxu0 %v790
        %837 = vmatprep.subr.bf16.mxu0 0
        %838 = vmatpush1.bf16.msra.mxu0 %v791
        %839 = vmatprep.subr.bf16.mxu0 0
        %840 = vmatpush1.bf16.msra.mxu0 %v792
        %841 = vmatprep.mubr.bf16.mxu0 %v660
        %842 = vmatmul.mubr.bf16.gmra.mrb[0].mxu0 %v659
        %v843 = vpop.f32.mrb[0].mxu0
        %v844 = vadd.f32 %v711, %v843
        %v845 = vpop.f32.mrb[0].mxu0
        %v846 = vpop.f32.mrb[0].mxu0
        %v847 = vadd.f32 %v711, %v846
        %v848 = vpop.f32.mrb[0].mxu0
        %849 = vmatprep.mubr.bf16.mxu0 %v662
        %850 = vmatmul.mubr.bf16.gmra.mrb[0].mxu0 %v661
        %v851 = vpop.f32.mrb[0].mxu0
        %v852 = vadd.f32 %v711, %v851
        %v853 = vpop.f32.mrb[0].mxu0
        %v854 = vpop.f32.mrb[0].mxu0
        %v855 = vadd.f32 %v711, %v854
        %v856 = vpop.f32.mrb[0].mxu0
        %857 = vmatprep.mubr.bf16.mxu0 %v664
        %858 = vmatmul.mubr.bf16.gmra.mrb[0].mxu0 %v663
        %v859 = vpop.f32.mrb[0].mxu0
        %v860 = vadd.f32 %v711, %v859
        %v861 = vpop.f32.mrb[0].mxu0
        %v862 = vpop.f32.mrb[0].mxu0
        %v863 = vadd.f32 %v711, %v862
        %v864 = vpop.f32.mrb[0].mxu0
        %865 = vmatprep.mubr.bf16.mxu0 %v666
        %866 = vmatmul.mubr.bf16.gmra.mrb[0].mxu0 %v665
        %v867 = vpop.f32.mrb[0].mxu0
        %v868 = vadd.f32 %v711, %v867
        %v869 = vpop.f32.mrb[0].mxu0
        %v870 = vpop.f32.mrb[0].mxu0
        %v871 = vadd.f32 %v711, %v870
        %v872 = vpop.f32.mrb[0].mxu0
        %873 = vdwg.mxu0
        %874 = vmatprep.subr.bf16.mxu0 0
        %875 = vmatpush1.bf16.msra.mxu0 %v777
        %876 = vmatprep.subr.bf16.mxu0 0
        %877 = vmatpush1.bf16.msra.mxu0 %v778
        %878 = vmatprep.subr.bf16.mxu0 0
        %879 = vmatpush1.bf16.msra.mxu0 %v779
        %880 = vmatprep.subr.bf16.mxu0 0
        %881 = vmatpush1.bf16.msra.mxu0 %v780
        %882 = vmatprep.subr.bf16.mxu0 0
        %883 = vmatpush1.bf16.msra.mxu0 %v781
        %884 = vmatprep.subr.bf16.mxu0 0
        %885 = vmatpush1.bf16.msra.mxu0 %v782
        %886 = vmatprep.subr.bf16.mxu0 0
        %887 = vmatpush1.bf16.msra.mxu0 %v783
        %888 = vmatprep.subr.bf16.mxu0 0
        %889 = vmatpush1.bf16.msra.mxu0 %v784
        %890 = vmatprep.subr.bf16.mxu0 0
        %891 = vmatpush1.bf16.msra.mxu0 %v785
        %892 = vmatprep.subr.bf16.mxu0 0
        %893 = vmatpush1.bf16.msra.mxu0 %v786
        %894 = vmatprep.subr.bf16.mxu0 0
        %895 = vmatpush1.bf16.msra.mxu0 %v787
        %896 = vmatprep.subr.bf16.mxu0 0
        %897 = vmatpush1.bf16.msra.mxu0 %v788
        %898 = vmatprep.subr.bf16.mxu0 0
        %899 = vmatpush1.bf16.msra.mxu0 %v789
        %900 = vmatprep.subr.bf16.mxu0 0
        %901 = vmatpush1.bf16.msra.mxu0 %v790
        %902 = vmatprep.subr.bf16.mxu0 0
        %903 = vmatpush1.bf16.msra.mxu0 %v791
        %904 = vmatprep.subr.bf16.mxu0 0
        %905 = vmatpush1.bf16.msra.mxu0 %v792
        %906 = vmatprep.mubr.bf16.mxu0 %v700
        %907 = vmatmul.mubr.bf16.gmra.mrb[0].mxu0 %v699
        %v908 = vpop.f32.mrb[0].mxu0
        %v909 = vadd.f32 %v711, %v908
        %v910 = vpop.f32.mrb[0].mxu0
        %v911 = vpop.f32.mrb[0].mxu0
        %v912 = vadd.f32 %v711, %v911
        %v913 = vpop.f32.mrb[0].mxu0
        %914 = vmatprep.mubr.bf16.mxu0 %v702
        %915 = vmatmul.mubr.bf16.gmra.mrb[0].mxu0 %v701
        %v916 = vpop.f32.mrb[0].mxu0
        %v917 = vadd.f32 %v711, %v916
        %v918 = vpop.f32.mrb[0].mxu0
        %v919 = vpop.f32.mrb[0].mxu0
        %v920 = vadd.f32 %v711, %v919
        %v921 = vpop.f32.mrb[0].mxu0
        %922 = vmatprep.mubr.bf16.mxu0 %v704
        %923 = vmatmul.mubr.bf16.gmra.mrb[0].mxu0 %v703
        %v924 = vpop.f32.mrb[0].mxu0
        %v925 = vadd.f32 %v711, %v924
        %v926 = vpop.f32.mrb[0].mxu0
        %v927 = vpop.f32.mrb[0].mxu0
        %v928 = vadd.f32 %v711, %v927
        %v929 = vpop.f32.mrb[0].mxu0
        %930 = vmatprep.mubr.bf16.mxu0 %v706
        %931 = vmatmul.mubr.bf16.gmra.mrb[0].mxu0 %v705
        %v932 = vpop.f32.mrb[0].mxu0
        %v933 = vadd.f32 %v711, %v932
        %v934 = vpop.f32.mrb[0].mxu0
        %v935 = vpop.f32.mrb[0].mxu0
        %v936 = vadd.f32 %v711, %v935
        %v937 = vpop.f32.mrb[0].mxu0
        %938 = vdwg.mxu0
        %v939 = vpack.c.bf16 %v847, %v844
        %v940 = vpack.c.bf16 %v855, %v852
        %v941 = vpack.c.bf16 %v863, %v860
        %v942 = vpack.c.bf16 %v871, %v868
        %v975 = vunpack.c.l.b16 %v579
        %v976 = vunpack.c.l.b16 %v580
        %v977 = vunpack.c.l.b16 %v581
        %v978 = vunpack.c.l.b16 %v582
        %v979 = vunpack.c.l.b16 %v583
        %v980 = vunpack.c.l.b16 %v584
        %v981 = vunpack.c.l.b16 %v585
        %v982 = vunpack.c.l.b16 %v586
        %v983 = vunpack.c.l.b16 %v587
        %v984 = vunpack.c.l.b16 %v588
        %v985 = vunpack.c.l.b16 %v589
        %v986 = vunpack.c.l.b16 %v590
        %v987 = vunpack.c.l.b16 %v591
        %v988 = vunpack.c.l.b16 %v592
        %v989 = vunpack.c.l.b16 %v593
        %v990 = vunpack.c.l.b16 %v594
        %v991 = vunpack.c.l.b16 %v595
        %v992 = vunpack.c.l.b16 %v596
        %v993 = vunpack.c.l.b16 %v597
        %v994 = vunpack.c.l.b16 %v598
        %v995 = vunpack.c.l.b16 %v599
        %v996 = vunpack.c.l.b16 %v600
        %v997 = vunpack.c.l.b16 %v601
        %v998 = vunpack.c.l.b16 %v602
        %v999 = vunpack.c.l.b16 %v603
        %v1000 = vunpack.c.l.b16 %v604
        %v1001 = vunpack.c.l.b16 %v605
        %v1002 = vunpack.c.l.b16 %v606
        %v1003 = vunpack.c.l.b16 %v607
        %v1004 = vunpack.c.l.b16 %v608
        %v1005 = vunpack.c.l.b16 %v609
        %v1006 = vunpack.c.l.b16 %v610
        %v1007 = vpack.c.b16 %v976, %v975
        %v1008 = vpack.c.b16 %v978, %v977
        %v1009 = vpack.c.b16 %v980, %v979
        %v1010 = vpack.c.b16 %v982, %v981
        %v1011 = vpack.c.b16 %v984, %v983
        %v1012 = vpack.c.b16 %v986, %v985
        %v1013 = vpack.c.b16 %v988, %v987
        %v1014 = vpack.c.b16 %v990, %v989
        %v1015 = vpack.c.b16 %v992, %v991
        %v1016 = vpack.c.b16 %v994, %v993
        %v1017 = vpack.c.b16 %v996, %v995
        %v1018 = vpack.c.b16 %v998, %v997
        %v1019 = vpack.c.b16 %v1000, %v999
        %v1020 = vpack.c.b16 %v1002, %v1001
        %v1021 = vpack.c.b16 %v1004, %v1003
        %v1022 = vpack.c.b16 %v1006, %v1005
        %vm1023 = vcmask 523264
        %v1025 = vsel %vm1023, %v1007, 0
        %v1028 = vsel %vm1023, %v1008, 0
        %v1031 = vsel %vm1023, %v1009, 0
        %v1034 = vsel %vm1023, %v1010, 0
        %v1037 = vsel %vm1023, %v1011, 0
        %v1040 = vsel %vm1023, %v1012, 0
        %v1043 = vsel %vm1023, %v1013, 0
        %v1046 = vsel %vm1023, %v1014, 0
        %v1049 = vsel %vm1023, %v1015, 0
        %v1052 = vsel %vm1023, %v1016, 0
        %v1055 = vsel %vm1023, %v1017, 0
        %v1058 = vsel %vm1023, %v1018, 0
        %v1061 = vsel %vm1023, %v1019, 0
        %v1064 = vsel %vm1023, %v1020, 0
        %v1067 = vsel %vm1023, %v1021, 0
        %v1070 = vsel %vm1023, %v1022, 0
        %1072 = vmatprep.subr.bf16.mxu0 0
        %1073 = vmatpush1.bf16.msra.mxu0 %v939
        %1074 = vmatprep.subr.bf16.mxu0 0
        %1075 = vmatpush1.bf16.msra.mxu0 %v940
        %1076 = vmatprep.subr.bf16.mxu0 0
        %1077 = vmatpush1.bf16.msra.mxu0 %v941
        %1078 = vmatprep.subr.bf16.mxu0 0
        %1079 = vmatpush1.bf16.msra.mxu0 %v942
        %1080 = vmatprep.subr.bf16.mxu0 0
        %1081 = vmatpush1.bf16.msra.mxu0 0
        %1082 = vmatprep.subr.bf16.mxu0 0
        %1083 = vmatpush1.bf16.msra.mxu0 0
        %1084 = vmatprep.subr.bf16.mxu0 0
        %1085 = vmatpush1.bf16.msra.mxu0 0
        %1086 = vmatprep.subr.bf16.mxu0 0
        %1087 = vmatpush1.bf16.msra.mxu0 0
        %1088 = vmatprep.subr.bf16.mxu0 0
        %1089 = vmatpush1.bf16.msra.mxu0 0
        %1090 = vmatprep.subr.bf16.mxu0 0
        %1091 = vmatpush1.bf16.msra.mxu0 0
        %1092 = vmatprep.subr.bf16.mxu0 0
        %1093 = vmatpush1.bf16.msra.mxu0 0
        %1094 = vmatprep.subr.bf16.mxu0 0
        %1095 = vmatpush1.bf16.msra.mxu0 0
        %1096 = vmatprep.subr.bf16.mxu0 0
        %1097 = vmatpush1.bf16.msra.mxu0 0
        %1098 = vmatprep.subr.bf16.mxu0 0
        %1099 = vmatpush1.bf16.msra.mxu0 0
        %1100 = vmatprep.subr.bf16.mxu0 0
        %1101 = vmatpush1.bf16.msra.mxu0 0
        %1102 = vmatprep.subr.bf16.mxu0 0
        %1103 = vmatpush1.bf16.msra.mxu0 0
        %1104 = vmatprep.mubr.bf16.mxu0 0
        %1105 = vmatmul.mubr.bf16.gmra.mrb[0].mxu0 %v1025
        %v1106 = vpop.f32.mrb[0].mxu0
        %v1107 = vadd.f32 0.0, %v1106
        %v1108 = vpop.f32.mrb[0].mxu0
        %v1109 = vpop.f32.mrb[0].mxu0
        %v1110 = vadd.f32 0.0, %v1109
        %v1111 = vpop.f32.mrb[0].mxu0
        %1112 = vmatprep.mubr.bf16.mxu0 0
        %1113 = vmatmul.mubr.bf16.gmra.mrb[0].mxu0 %v1028
        %v1114 = vpop.f32.mrb[0].mxu0
        %v1115 = vadd.f32 0.0, %v1114
        %v1116 = vpop.f32.mrb[0].mxu0
        %v1117 = vpop.f32.mrb[0].mxu0
        %v1118 = vadd.f32 0.0, %v1117
        %v1119 = vpop.f32.mrb[0].mxu0
        %1120 = vmatprep.mubr.bf16.mxu0 0
        %1121 = vmatmul.mubr.bf16.gmra.mrb[0].mxu0 %v1031
        %v1122 = vpop.f32.mrb[0].mxu0
        %v1123 = vadd.f32 0.0, %v1122
        %v1124 = vpop.f32.mrb[0].mxu0
        %v1125 = vpop.f32.mrb[0].mxu0
        %v1126 = vadd.f32 0.0, %v1125
        %v1127 = vpop.f32.mrb[0].mxu0
        %1128 = vmatprep.mubr.bf16.mxu0 0
        %1129 = vmatmul.mubr.bf16.gmra.mrb[0].mxu0 %v1034
        %v1130 = vpop.f32.mrb[0].mxu0
        %v1131 = vadd.f32 0.0, %v1130
        %v1132 = vpop.f32.mrb[0].mxu0
        %v1133 = vpop.f32.mrb[0].mxu0
        %v1134 = vadd.f32 0.0, %v1133
        %v1135 = vpop.f32.mrb[0].mxu0
        %1136 = vmatprep.mubr.bf16.mxu0 0
        %1137 = vmatmul.mubr.bf16.gmra.mrb[0].mxu0 %v1037
        %v1138 = vpop.f32.mrb[0].mxu0
        %v1139 = vadd.f32 0.0, %v1138
        %v1140 = vpop.f32.mrb[0].mxu0
        %v1141 = vpop.f32.mrb[0].mxu0
        %v1142 = vadd.f32 0.0, %v1141
        %v1143 = vpop.f32.mrb[0].mxu0
        %1144 = vmatprep.mubr.bf16.mxu0 0
        %1145 = vmatmul.mubr.bf16.gmra.mrb[0].mxu0 %v1040
        %v1146 = vpop.f32.mrb[0].mxu0
        %v1147 = vadd.f32 0.0, %v1146
        %v1148 = vpop.f32.mrb[0].mxu0
        %v1149 = vpop.f32.mrb[0].mxu0
        %v1150 = vadd.f32 0.0, %v1149
        %v1151 = vpop.f32.mrb[0].mxu0
        %1152 = vmatprep.mubr.bf16.mxu0 0
        %1153 = vmatmul.mubr.bf16.gmra.mrb[0].mxu0 %v1043
        %v1154 = vpop.f32.mrb[0].mxu0
        %v1155 = vadd.f32 0.0, %v1154
        %v1156 = vpop.f32.mrb[0].mxu0
        %v1157 = vpop.f32.mrb[0].mxu0
        %v1158 = vadd.f32 0.0, %v1157
        %v1159 = vpop.f32.mrb[0].mxu0
        %1160 = vmatprep.mubr.bf16.mxu0 0
        %1161 = vmatmul.mubr.bf16.gmra.mrb[0].mxu0 %v1046
        %v1162 = vpop.f32.mrb[0].mxu0
        %v1163 = vadd.f32 0.0, %v1162
        %v1164 = vpop.f32.mrb[0].mxu0
        %v1165 = vpop.f32.mrb[0].mxu0
        %v1166 = vadd.f32 0.0, %v1165
        %v1167 = vpop.f32.mrb[0].mxu0
        %1168 = vmatprep.mubr.bf16.mxu0 0
        %1169 = vmatmul.mubr.bf16.gmra.mrb[0].mxu0 %v1049
        %v1170 = vpop.f32.mrb[0].mxu0
        %v1171 = vadd.f32 0.0, %v1170
        %v1172 = vpop.f32.mrb[0].mxu0
        %v1173 = vpop.f32.mrb[0].mxu0
        %v1174 = vadd.f32 0.0, %v1173
        %v1175 = vpop.f32.mrb[0].mxu0
        %1176 = vmatprep.mubr.bf16.mxu0 0
        %1177 = vmatmul.mubr.bf16.gmra.mrb[0].mxu0 %v1052
        %v1178 = vpop.f32.mrb[0].mxu0
        %v1179 = vadd.f32 0.0, %v1178
        %v1180 = vpop.f32.mrb[0].mxu0
        %v1181 = vpop.f32.mrb[0].mxu0
        %v1182 = vadd.f32 0.0, %v1181
        %v1183 = vpop.f32.mrb[0].mxu0
        %1184 = vmatprep.mubr.bf16.mxu0 0
        %1185 = vmatmul.mubr.bf16.gmra.mrb[0].mxu0 %v1055
        %v1186 = vpop.f32.mrb[0].mxu0
        %v1187 = vadd.f32 0.0, %v1186
        %v1188 = vpop.f32.mrb[0].mxu0
        %v1189 = vpop.f32.mrb[0].mxu0
        %v1190 = vadd.f32 0.0, %v1189
        %v1191 = vpop.f32.mrb[0].mxu0
        %1192 = vmatprep.mubr.bf16.mxu0 0
        %1193 = vmatmul.mubr.bf16.gmra.mrb[0].mxu0 %v1058
        %v1194 = vpop.f32.mrb[0].mxu0
        %v1195 = vadd.f32 0.0, %v1194
        %v1196 = vpop.f32.mrb[0].mxu0
        %v1197 = vpop.f32.mrb[0].mxu0
        %v1198 = vadd.f32 0.0, %v1197
        %v1199 = vpop.f32.mrb[0].mxu0
        %1200 = vmatprep.mubr.bf16.mxu0 0
        %1201 = vmatmul.mubr.bf16.gmra.mrb[0].mxu0 %v1061
        %v1202 = vpop.f32.mrb[0].mxu0
        %v1203 = vadd.f32 0.0, %v1202
        %v1204 = vpop.f32.mrb[0].mxu0
        %v1205 = vpop.f32.mrb[0].mxu0
        %v1206 = vadd.f32 0.0, %v1205
        %v1207 = vpop.f32.mrb[0].mxu0
        %1208 = vmatprep.mubr.bf16.mxu0 0
        %1209 = vmatmul.mubr.bf16.gmra.mrb[0].mxu0 %v1064
        %v1210 = vpop.f32.mrb[0].mxu0
        %v1211 = vadd.f32 0.0, %v1210
        %v1212 = vpop.f32.mrb[0].mxu0
        %v1213 = vpop.f32.mrb[0].mxu0
        %v1214 = vadd.f32 0.0, %v1213
        %v1215 = vpop.f32.mrb[0].mxu0
        %1216 = vmatprep.mubr.bf16.mxu0 0
        %1217 = vmatmul.mubr.bf16.gmra.mrb[0].mxu0 %v1067
        %v1218 = vpop.f32.mrb[0].mxu0
        %v1219 = vadd.f32 0.0, %v1218
        %v1220 = vpop.f32.mrb[0].mxu0
        %v1221 = vpop.f32.mrb[0].mxu0
        %v1222 = vadd.f32 0.0, %v1221
        %v1223 = vpop.f32.mrb[0].mxu0
        %1224 = vmatprep.mubr.bf16.mxu0 0
        %1225 = vmatmul.mubr.bf16.gmra.mrb[0].mxu0 %v1070
        %v1226 = vpop.f32.mrb[0].mxu0
        %v1227 = vadd.f32 0.0, %v1226
        %v1228 = vpop.f32.mrb[0].mxu0
        %v1229 = vpop.f32.mrb[0].mxu0
        %v1230 = vadd.f32 0.0, %v1229
        %v1231 = vpop.f32.mrb[0].mxu0
        %1232 = vdwg.mxu0
        %1233 = vst [vmem:[%s416] sm:$0xff] %v1107
        %1234 = vst [vmem:[%s416 + $0x8] sm:$0xff] %v1110
        %1235 = vst [vmem:[%s416 + $0x10] sm:$0xff] %v1115
        %1236 = vst [vmem:[%s416 + $0x18] sm:$0xff] %v1118
        %1237 = vst [vmem:[%s416 + $0x20] sm:$0xff] %v1123
        %1238 = vst [vmem:[%s416 + $0x28] sm:$0xff] %v1126
        %1239 = vst [vmem:[%s416 + $0x30] sm:$0xff] %v1131
        %1240 = vst [vmem:[%s416 + $0x38] sm:$0xff] %v1134
        %1241 = vst [vmem:[%s416 + $0x40] sm:$0xff] %v1139
        %1242 = vst [vmem:[%s416 + $0x48] sm:$0xff] %v1142
        %1243 = vst [vmem:[%s416 + $0x50] sm:$0xff] %v1147
        %1244 = vst [vmem:[%s416 + $0x58] sm:$0xff] %v1150
        %1245 = vst [vmem:[%s416 + $0x60] sm:$0xff] %v1155
        %1246 = vst [vmem:[%s416 + $0x68] sm:$0xff] %v1158
        %1247 = vst [vmem:[%s416 + $0x70] sm:$0xff] %v1163
        %1248 = vst [vmem:[%s416 + $0x78] sm:$0xff] %v1166
        %1249 = vst [vmem:[%s416 + $0x80] sm:$0xff] %v1171
        %1250 = vst [vmem:[%s416 + $0x88] sm:$0xff] %v1174
        %1251 = vst [vmem:[%s416 + $0x90] sm:$0xff] %v1179
        %1252 = vst [vmem:[%s416 + $0x98] sm:$0xff] %v1182
        %1253 = vst [vmem:[%s416 + $0xa0] sm:$0xff] %v1187
        %1254 = vst [vmem:[%s416 + $0xa8] sm:$0xff] %v1190
        %1255 = vst [vmem:[%s416 + $0xb0] sm:$0xff] %v1195
        %1256 = vst [vmem:[%s416 + $0xb8] sm:$0xff] %v1198
        %1257 = vst [vmem:[%s416 + $0xc0] sm:$0xff] %v1203
        %1258 = vst [vmem:[%s416 + $0xc8] sm:$0xff] %v1206
        %1259 = vst [vmem:[%s416 + $0xd0] sm:$0xff] %v1211
        %1260 = vst [vmem:[%s416 + $0xd8] sm:$0xff] %v1214
        %1261 = vst [vmem:[%s416 + $0xe0] sm:$0xff] %v1219
        %1262 = vst [vmem:[%s416 + $0xe8] sm:$0xff] %v1222
        %1263 = vst [vmem:[%s416 + $0xf0] sm:$0xff] %v1227
        %1264 = vst [vmem:[%s416 + $0xf8] sm:$0xff] %v1230
        %v1265 = vpack.c.bf16 %v912, %v909
        %v1266 = vpack.c.bf16 %v920, %v917
        %v1267 = vpack.c.bf16 %v928, %v925
        %v1268 = vpack.c.bf16 %v936, %v933
        %1269 = vmatprep.subr.bf16.mxu0 0
        %1270 = vmatpush1.bf16.msra.mxu0 %v1265
        %1271 = vmatprep.subr.bf16.mxu0 0
        %1272 = vmatpush1.bf16.msra.mxu0 %v1266
        %1273 = vmatprep.subr.bf16.mxu0 0
        %1274 = vmatpush1.bf16.msra.mxu0 %v1267
        %1275 = vmatprep.subr.bf16.mxu0 0
        %1276 = vmatpush1.bf16.msra.mxu0 %v1268
        %1277 = vmatprep.subr.bf16.mxu0 0
        %1278 = vmatpush1.bf16.msra.mxu0 0
        %1279 = vmatprep.subr.bf16.mxu0 0
        %1280 = vmatpush1.bf16.msra.mxu0 0
        %1281 = vmatprep.subr.bf16.mxu0 0
        %1282 = vmatpush1.bf16.msra.mxu0 0
        %1283 = vmatprep.subr.bf16.mxu0 0
        %1284 = vmatpush1.bf16.msra.mxu0 0
        %1285 = vmatprep.subr.bf16.mxu0 0
        %1286 = vmatpush1.bf16.msra.mxu0 0
        %1287 = vmatprep.subr.bf16.mxu0 0
        %1288 = vmatpush1.bf16.msra.mxu0 0
        %1289 = vmatprep.subr.bf16.mxu0 0
        %1290 = vmatpush1.bf16.msra.mxu0 0
        %1291 = vmatprep.subr.bf16.mxu0 0
        %1292 = vmatpush1.bf16.msra.mxu0 0
        %1293 = vmatprep.subr.bf16.mxu0 0
        %1294 = vmatpush1.bf16.msra.mxu0 0
        %1295 = vmatprep.subr.bf16.mxu0 0
        %1296 = vmatpush1.bf16.msra.mxu0 0
        %1297 = vmatprep.subr.bf16.mxu0 0
        %1298 = vmatpush1.bf16.msra.mxu0 0
        %1299 = vmatprep.subr.bf16.mxu0 0
        %1300 = vmatpush1.bf16.msra.mxu0 0
        %1301 = vmatprep.mubr.bf16.mxu0 0
        %1302 = vmatmul.mubr.bf16.gmra.mrb[0].mxu0 %v1025
        %v1303 = vpop.f32.mrb[0].mxu0
        %v1304 = vadd.f32 0.0, %v1303
        %v1305 = vpop.f32.mrb[0].mxu0
        %v1306 = vpop.f32.mrb[0].mxu0
        %v1307 = vadd.f32 0.0, %v1306
        %v1308 = vpop.f32.mrb[0].mxu0
        %1309 = vmatprep.mubr.bf16.mxu0 0
        %1310 = vmatmul.mubr.bf16.gmra.mrb[0].mxu0 %v1028
        %v1311 = vpop.f32.mrb[0].mxu0
        %v1312 = vadd.f32 0.0, %v1311
        %v1313 = vpop.f32.mrb[0].mxu0
        %v1314 = vpop.f32.mrb[0].mxu0
        %v1315 = vadd.f32 0.0, %v1314
        %v1316 = vpop.f32.mrb[0].mxu0
        %1317 = vmatprep.mubr.bf16.mxu0 0
        %1318 = vmatmul.mubr.bf16.gmra.mrb[0].mxu0 %v1031
        %v1319 = vpop.f32.mrb[0].mxu0
        %v1320 = vadd.f32 0.0, %v1319
        %v1321 = vpop.f32.mrb[0].mxu0
        %v1322 = vpop.f32.mrb[0].mxu0
        %v1323 = vadd.f32 0.0, %v1322
        %v1324 = vpop.f32.mrb[0].mxu0
        %1325 = vmatprep.mubr.bf16.mxu0 0
        %1326 = vmatmul.mubr.bf16.gmra.mrb[0].mxu0 %v1034
        %v1327 = vpop.f32.mrb[0].mxu0
        %v1328 = vadd.f32 0.0, %v1327
        %v1329 = vpop.f32.mrb[0].mxu0
        %v1330 = vpop.f32.mrb[0].mxu0
        %v1331 = vadd.f32 0.0, %v1330
        %v1332 = vpop.f32.mrb[0].mxu0
        %1333 = vmatprep.mubr.bf16.mxu0 0
        %1334 = vmatmul.mubr.bf16.gmra.mrb[0].mxu0 %v1037
        %v1335 = vpop.f32.mrb[0].mxu0
        %v1336 = vadd.f32 0.0, %v1335
        %v1337 = vpop.f32.mrb[0].mxu0
        %v1338 = vpop.f32.mrb[0].mxu0
        %v1339 = vadd.f32 0.0, %v1338
        %v1340 = vpop.f32.mrb[0].mxu0
        %1341 = vmatprep.mubr.bf16.mxu0 0
        %1342 = vmatmul.mubr.bf16.gmra.mrb[0].mxu0 %v1040
        %v1343 = vpop.f32.mrb[0].mxu0
        %v1344 = vadd.f32 0.0, %v1343
        %v1345 = vpop.f32.mrb[0].mxu0
        %v1346 = vpop.f32.mrb[0].mxu0
        %v1347 = vadd.f32 0.0, %v1346
        %v1348 = vpop.f32.mrb[0].mxu0
        %1349 = vmatprep.mubr.bf16.mxu0 0
        %1350 = vmatmul.mubr.bf16.gmra.mrb[0].mxu0 %v1043
        %v1351 = vpop.f32.mrb[0].mxu0
        %v1352 = vadd.f32 0.0, %v1351
        %v1353 = vpop.f32.mrb[0].mxu0
        %v1354 = vpop.f32.mrb[0].mxu0
        %v1355 = vadd.f32 0.0, %v1354
        %v1356 = vpop.f32.mrb[0].mxu0
        %1357 = vmatprep.mubr.bf16.mxu0 0
        %1358 = vmatmul.mubr.bf16.gmra.mrb[0].mxu0 %v1046
        %v1359 = vpop.f32.mrb[0].mxu0
        %v1360 = vadd.f32 0.0, %v1359
        %v1361 = vpop.f32.mrb[0].mxu0
        %v1362 = vpop.f32.mrb[0].mxu0
        %v1363 = vadd.f32 0.0, %v1362
        %v1364 = vpop.f32.mrb[0].mxu0
        %1365 = vmatprep.mubr.bf16.mxu0 0
        %1366 = vmatmul.mubr.bf16.gmra.mrb[0].mxu0 %v1049
        %v1367 = vpop.f32.mrb[0].mxu0
        %v1368 = vadd.f32 0.0, %v1367
        %v1369 = vpop.f32.mrb[0].mxu0
        %v1370 = vpop.f32.mrb[0].mxu0
        %v1371 = vadd.f32 0.0, %v1370
        %v1372 = vpop.f32.mrb[0].mxu0
        %1373 = vmatprep.mubr.bf16.mxu0 0
        %1374 = vmatmul.mubr.bf16.gmra.mrb[0].mxu0 %v1052
        %v1375 = vpop.f32.mrb[0].mxu0
        %v1376 = vadd.f32 0.0, %v1375
        %v1377 = vpop.f32.mrb[0].mxu0
        %v1378 = vpop.f32.mrb[0].mxu0
        %v1379 = vadd.f32 0.0, %v1378
        %v1380 = vpop.f32.mrb[0].mxu0
        %1381 = vmatprep.mubr.bf16.mxu0 0
        %1382 = vmatmul.mubr.bf16.gmra.mrb[0].mxu0 %v1055
        %v1383 = vpop.f32.mrb[0].mxu0
        %v1384 = vadd.f32 0.0, %v1383
        %v1385 = vpop.f32.mrb[0].mxu0
        %v1386 = vpop.f32.mrb[0].mxu0
        %v1387 = vadd.f32 0.0, %v1386
        %v1388 = vpop.f32.mrb[0].mxu0
        %1389 = vmatprep.mubr.bf16.mxu0 0
        %1390 = vmatmul.mubr.bf16.gmra.mrb[0].mxu0 %v1058
        %v1391 = vpop.f32.mrb[0].mxu0
        %v1392 = vadd.f32 0.0, %v1391
        %v1393 = vpop.f32.mrb[0].mxu0
        %v1394 = vpop.f32.mrb[0].mxu0
        %v1395 = vadd.f32 0.0, %v1394
        %v1396 = vpop.f32.mrb[0].mxu0
        %1397 = vmatprep.mubr.bf16.mxu0 0
        %1398 = vmatmul.mubr.bf16.gmra.mrb[0].mxu0 %v1061
        %v1399 = vpop.f32.mrb[0].mxu0
        %v1400 = vadd.f32 0.0, %v1399
        %v1401 = vpop.f32.mrb[0].mxu0
        %v1402 = vpop.f32.mrb[0].mxu0
        %v1403 = vadd.f32 0.0, %v1402
        %v1404 = vpop.f32.mrb[0].mxu0
        %1405 = vmatprep.mubr.bf16.mxu0 0
        %1406 = vmatmul.mubr.bf16.gmra.mrb[0].mxu0 %v1064
        %v1407 = vpop.f32.mrb[0].mxu0
        %v1408 = vadd.f32 0.0, %v1407
        %v1409 = vpop.f32.mrb[0].mxu0
        %v1410 = vpop.f32.mrb[0].mxu0
        %v1411 = vadd.f32 0.0, %v1410
        %v1412 = vpop.f32.mrb[0].mxu0
        %1413 = vmatprep.mubr.bf16.mxu0 0
        %1414 = vmatmul.mubr.bf16.gmra.mrb[0].mxu0 %v1067
        %v1415 = vpop.f32.mrb[0].mxu0
        %v1416 = vadd.f32 0.0, %v1415
        %v1417 = vpop.f32.mrb[0].mxu0
        %v1418 = vpop.f32.mrb[0].mxu0
        %v1419 = vadd.f32 0.0, %v1418
        %v1420 = vpop.f32.mrb[0].mxu0
        %1421 = vmatprep.mubr.bf16.mxu0 0
        %1422 = vmatmul.mubr.bf16.gmra.mrb[0].mxu0 %v1070
        %v1423 = vpop.f32.mrb[0].mxu0
        %v1424 = vadd.f32 0.0, %v1423
        %v1425 = vpop.f32.mrb[0].mxu0
        %v1426 = vpop.f32.mrb[0].mxu0
        %v1427 = vadd.f32 0.0, %v1426
        %v1428 = vpop.f32.mrb[0].mxu0
        %1429 = vdwg.mxu0
        %s1430 = scalar_lea.vmem %s416, 256 [#allocation7]
        %1431 = vst [vmem:[%s1430] sm:$0xff] %v1304
        %1432 = vst [vmem:[%s1430 + $0x8] sm:$0xff] %v1307
        %1433 = vst [vmem:[%s1430 + $0x10] sm:$0xff] %v1312
        %1434 = vst [vmem:[%s1430 + $0x18] sm:$0xff] %v1315
        %1435 = vst [vmem:[%s1430 + $0x20] sm:$0xff] %v1320
        %1436 = vst [vmem:[%s1430 + $0x28] sm:$0xff] %v1323
        %1437 = vst [vmem:[%s1430 + $0x30] sm:$0xff] %v1328
        %1438 = vst [vmem:[%s1430 + $0x38] sm:$0xff] %v1331
        %1439 = vst [vmem:[%s1430 + $0x40] sm:$0xff] %v1336
        %1440 = vst [vmem:[%s1430 + $0x48] sm:$0xff] %v1339
        %1441 = vst [vmem:[%s1430 + $0x50] sm:$0xff] %v1344
        %1442 = vst [vmem:[%s1430 + $0x58] sm:$0xff] %v1347
        %1443 = vst [vmem:[%s1430 + $0x60] sm:$0xff] %v1352
        %1444 = vst [vmem:[%s1430 + $0x68] sm:$0xff] %v1355
        %1445 = vst [vmem:[%s1430 + $0x70] sm:$0xff] %v1360
        %1446 = vst [vmem:[%s1430 + $0x78] sm:$0xff] %v1363
        %1447 = vst [vmem:[%s1430 + $0x80] sm:$0xff] %v1368
        %1448 = vst [vmem:[%s1430 + $0x88] sm:$0xff] %v1371
        %1449 = vst [vmem:[%s1430 + $0x90] sm:$0xff] %v1376
        %1450 = vst [vmem:[%s1430 + $0x98] sm:$0xff] %v1379
        %1451 = vst [vmem:[%s1430 + $0xa0] sm:$0xff] %v1384
        %1452 = vst [vmem:[%s1430 + $0xa8] sm:$0xff] %v1387
        %1453 = vst [vmem:[%s1430 + $0xb0] sm:$0xff] %v1392
        %1454 = vst [vmem:[%s1430 + $0xb8] sm:$0xff] %v1395
        %1455 = vst [vmem:[%s1430 + $0xc0] sm:$0xff] %v1400
        %1456 = vst [vmem:[%s1430 + $0xc8] sm:$0xff] %v1403
        %1457 = vst [vmem:[%s1430 + $0xd0] sm:$0xff] %v1408
        %1458 = vst [vmem:[%s1430 + $0xd8] sm:$0xff] %v1411
        %1459 = vst [vmem:[%s1430 + $0xe0] sm:$0xff] %v1416
        %1460 = vst [vmem:[%s1430 + $0xe8] sm:$0xff] %v1419
        %1461 = vst [vmem:[%s1430 + $0xf0] sm:$0xff] %v1424
        %1462 = vst [vmem:[%s1430 + $0xf8] sm:$0xff] %v1427
        %s1463 = sand.u32 %s219, 1
        %s1464 = scalar_lea.sflag [#allocation4], %s1463
        %s1465 = sand.u32 %s219, 1
        %s1466 = smul.addr %s1465, 512
        %s1467 = scalar_lea.vmem [#allocation7], %s1466
        // Predicated region
        $region53: #{upconv2x2x2.1} parent=43 // pred_check
          %p1468 = pneg %p229
        $region54: #{upconv2x2x2.1} parent=43 // pred_check_branch
          %1470 = sbr.rel (%p1468) target = $region56
        $region55: #{upconv2x2x2.1} parent=43 // pred_region
          %s1471 = smul.u32 2, %s27
          %s1473 = ssub.s32 8192, 8192
          %1474 = vsyncadd %s1464, %s1473
          %s1475 = smul.addr %s1471, 32
          %s1476 = smul.addr %s26, 256
          %s1477 = sadd.s32 %s1475, %s1476
          %s1478 = smul.addr %s1477, 128
          %s1479 = scalar_lea.hbm %s6, %s1478
          %s1480 = sshll.u32 %s1467, 4
          %s1481 = int_to_ptr.vmem [resolvable:$true] %s1480
          %1486 = dma.vmem_to_hbm [thread:$0]  %s1481, 8192, %s1479, %s1464, 128, 128, 8
        $region56: #{upconv2x2x2.1} parent=43 // pred_fallthru
          _
      $region44: #{upconv2x2x2.1} parent=5 // pred_fallthru
        _
      %p1487 = scmp.le.s32.totalorder 2, %s17
      // Predicated region
      $region57: #{upconv2x2x2.1} parent=5 // pred_check
        %p1488 = pneg %p1487
      $region58: #{upconv2x2x2.1} parent=5 // pred_check_branch
        %1490 = sbr.rel (%p1488) target = $region60
      $region59: #{upconv2x2x2.1} parent=5 // pred_region
        %s1491 = ssub.s32 %s17, 2
        // Predicated region
        $region61: #{upconv2x2x2.1} parent=59 // pred_check
          %p1492 = pneg %p235
        $region62: #{upconv2x2x2.1} parent=59 // pred_check_branch
          %1494 = sbr.rel (%p1492) target = $region64
        $region63: #{upconv2x2x2.1} parent=59 // pred_region
          %s1495 = sand.u32 %s220, 1
          %s1496 = scalar_lea.sflag [#allocation4], %s1495
          %s1497 = sand.u32 %s220, 1
          %s1498 = smul.addr %s1497, 512
          %s1499 = scalar_lea.vmem [#allocation7], %s1498
          %1500 = dma.done %s1496, 8192
        $region64: #{upconv2x2x2.1} parent=59 // pred_fallthru
          _
      $region60: #{upconv2x2x2.1} parent=5 // pred_fallthru
        _
    $region6: #{upconv2x2x2.1} parent=1 // loop_footer
      %s21 = sadd.s32 1, %s17
    $region7: #{upconv2x2x2.1} parent=1 // loop_footer_branch
      %16 = sbr.rel target = $region3
    $region8: #{upconv2x2x2.1} parent=1 // loop_exit
      _
    %1501 = vsyncpa [#allocation3], 1
    %s1502 = scalar_lea.sflag [#allocation3], 1
    %1503 = vsyncpa %s1502, 1
    %1504 = vsyncpa [#allocation6], 1
    %1505 = vsyncpa [#allocation4], 1
    %s1506 = scalar_lea.sflag [#allocation4], 1
    %1507 = vsyncpa %s1506, 1

</llo_original>
